<compile_context>
chip_gen: v5e
topology: v5e:2x2
jax: 0.10.0
libtpu: 0.0.40
codegen_flags: <defaults>
</compile_context>

<pallas_src>
import math

import jax
import jax.numpy as jnp
from jax import lax
from jax.experimental import pallas as pl
from jax.experimental.pallas import tpu as pltpu


def _round_up(x, m):
    return ((x + m - 1) // m) * m


def _sigmoid(z):
    # tanh-based sigmoid: guaranteed Mosaic lowering, mathematically identical.
    return 0.5 * (jnp.tanh(0.5 * z) + 1.0)


def _lstm_cls_kernel(x_ref, wih_ref, whh_ref, bg_ref, wc_ref, bc_ref, o_ref, xg_ref):
    # x_ref : (T, TB, Ip)   time-major batch tile
    # wih   : (Ip, 4*Hp), whh: (Hp, 4*Hp), bg: (1, 4*Hp)  (b_ih + b_hh combined)
    # wc    : (Hp, Cp),  bc: (1, Cp)
    # o_ref : (TB, Cp)
    # xg_ref: (T*TB, 4*Hp) VMEM scratch holding precomputed input-gate activations
    T = x_ref.shape[0]
    TB = o_ref.shape[0]
    Hp = whh_ref.shape[0]

    # ---- Phase 1: batched input projection for all timesteps (one big MXU matmul).
    # Rows are grouped time-major: timestep t occupies rows [t*TB, (t+1)*TB).
    # Static-index slices concatenated along the sublane axis (TB % 8 == 0).
    x2d = jnp.concatenate([x_ref[t] for t in range(T)], axis=0)        # (T*TB, Ip)
    xg_ref[...] = (
        jnp.dot(x2d, wih_ref[...], preferred_element_type=jnp.float32)
        + bg_ref[...]                                                   # bias folded in once
    )

    whh = whh_ref[...]

    # ---- Phase 2: serial recurrence; only the h @ W_hh matmul remains per step.
    def step(t, carry):
        h, c = carry
        row = pl.multiple_of(t * TB, TB)
        gates = xg_ref[pl.ds(row, TB), :] + jnp.dot(
            h, whh, preferred_element_type=jnp.float32
        )
        i_g = _sigmoid(gates[:, 0 * Hp:1 * Hp])
        f_g = _sigmoid(gates[:, 1 * Hp:2 * Hp])
        g_g = jnp.tanh(gates[:, 2 * Hp:3 * Hp])
        o_g = _sigmoid(gates[:, 3 * Hp:4 * Hp])
        c_new = f_g * c + i_g * g_g
        h_new = o_g * jnp.tanh(c_new)
        return h_new, c_new

    h0 = jnp.zeros((TB, Hp), jnp.float32)
    c0 = jnp.zeros((TB, Hp), jnp.float32)
    h, _ = lax.fori_loop(0, T, step, (h0, c0), unroll=(T <= 16))

    # ---- Phase 3: classifier on the final hidden state (lane-dense store).
    out = jnp.dot(h, wc_ref[...], preferred_element_type=jnp.float32) + bc_ref[...]
    o_ref[...] = out.astype(o_ref.dtype)


def simple_sequence_classifier_forward(x, padded_params, n_classes):
    """x: (B, T, input_size). Returns (B, n_classes)."""
    wih_p, whh_p, bg_p, wc_p, bc_p = padded_params
    B, T, I = x.shape
    Ip = wih_p.shape[0]
    Hp = whh_p.shape[0]
    Cp = wc_p.shape[1]

    # Batch tiling: large tiles amortize the ~0.35us/step grid overhead; tiny batches
    # just round up to the 8-sublane minimum.  Cap the tile so the precomputed-gate
    # scratch (T*TB, 4*Hp) f32 stays under ~8 MiB of VMEM.
    TB = min(256, _round_up(B, 8))
    gate_row_bytes = 4 * Hp * 4
    max_tb = max(8, (((8 * 1024 * 1024) // (T * gate_row_bytes)) // 8) * 8)
    TB = max(8, min(TB, max_tb))
    Bp = _round_up(B, TB)

    # Pad batch + input feature dim; time-major so x_ref[t] indexes axis 0.
    x_p = jnp.zeros((T, Bp, Ip), jnp.float32)
    x_p = x_p.at[:, :B, :I].set(jnp.swapaxes(x.astype(jnp.float32), 0, 1))

    grid = (Bp // TB,)
    resident = lambda arr: pl.BlockSpec(arr.shape, lambda i: (0, 0))

    out_p = pl.pallas_call(
        _lstm_cls_kernel,
        out_shape=jax.ShapeDtypeStruct((Bp, Cp), jnp.float32),
        grid=grid,
        in_specs=[
            pl.BlockSpec((T, TB, Ip), lambda i: (0, i, 0)),  # streamed batch tile
            resident(wih_p),
            resident(whh_p),
            resident(bg_p),
            resident(wc_p),
            resident(bc_p),
        ],
        out_specs=pl.BlockSpec((TB, Cp), lambda i: (i, 0)),
        scratch_shapes=[pltpu.VMEM((T * TB, 4 * Hp), jnp.float32)],
        compiler_params=pltpu.CompilerParams(
            dimension_semantics=("parallel",),
            vmem_limit_bytes=32 * 1024 * 1024,
        ),
    )(x_p, wih_p, whh_p, bg_p, wc_p, bc_p)

    return out_p[:B, :n_classes]


def init_params(key, input_size, hidden_size, n_classes):
    """PyTorch-style default init: U[-1/sqrt(hidden), 1/sqrt(hidden)]."""
    ks = jax.random.split(key, 6)
    bound = 1.0 / math.sqrt(hidden_size)
    u = lambda k, shape: jax.random.uniform(k, shape, jnp.float32, -bound, bound)
    w_ih = u(ks[0], (4, hidden_size, input_size))   # gate order: i, f, g, o
    w_hh = u(ks[1], (4, hidden_size, hidden_size))
    b_ih = u(ks[2], (4, hidden_size))
    b_hh = u(ks[3], (4, hidden_size))
    w_c = u(ks[4], (n_classes, hidden_size))
    b_c = u(ks[5], (n_classes,))
    return (w_ih, w_hh, b_ih, b_hh, w_c, b_c)


def pad_params(params, input_size, hidden_size, n_classes):
    """Zero-pad to lane/sublane-aligned shapes, transposed to (in, out) layout."""
    w_ih, w_hh, b_ih, b_hh, w_c, b_c = params
    Ip = _round_up(max(input_size, 8), 8)
    Hp = _round_up(max(hidden_size, 128), 128)
    Cp = _round_up(max(n_classes, 128), 128)

    wih_p = jnp.zeros((Ip, 4 * Hp), jnp.float32)
    whh_p = jnp.zeros((Hp, 4 * Hp), jnp.float32)
    bg_p = jnp.zeros((1, 4 * Hp), jnp.float32)
    for g in range(4):
        wih_p = wih_p.at[:input_size, g * Hp:g * Hp + hidden_size].set(w_ih[g].T)
        whh_p = whh_p.at[:hidden_size, g * Hp:g * Hp + hidden_size].set(w_hh[g].T)
        bg_p = bg_p.at[0, g * Hp:g * Hp + hidden_size].set(b_ih[g] + b_hh[g])

    wc_p = jnp.zeros((Hp, Cp), jnp.float32).at[:hidden_size, :n_classes].set(w_c.T)
    bc_p = jnp.zeros((1, Cp), jnp.float32).at[0, :n_classes].set(b_c)
    return (wih_p, whh_p, bg_p, wc_p, bc_p)


def lstm_classifier_ref(x, params):
    """Pure-JAX reference matching torch.nn.LSTM(batch_first=True) + Linear."""
    w_ih, w_hh, b_ih, b_hh, w_c, b_c = params
    B = x.shape[0]
    H = w_hh.shape[-1]

    def step(carry, x_t):
        h, c = carry
        zi = x_t @ w_ih[0].T + h @ w_hh[0].T + b_ih[0] + b_hh[0]
        zf = x_t @ w_ih[1].T + h @ w_hh[1].T + b_ih[1] + b_hh[1]
        zg = x_t @ w_ih[2].T + h @ w_hh[2].T + b_ih[2] + b_hh[2]
        zo = x_t @ w_ih[3].T + h @ w_hh[3].T + b_ih[3] + b_hh[3]
        i = jax.nn.sigmoid(zi)
        f = jax.nn.sigmoid(zf)
        g = jnp.tanh(zg)
        o = jax.nn.sigmoid(zo)
        c = f * c + i * g
        h = o * jnp.tanh(c)
        return (h, c), None

    h0 = jnp.zeros((B, H), jnp.float32)
    c0 = jnp.zeros((B, H), jnp.float32)
    (h, _), _ = lax.scan(step, (h0, c0), jnp.swapaxes(x, 0, 1))
    return h @ w_c.T + b_c


if __name__ == "__main__":
    key = jax.random.PRNGKey(0)
    k_params, k_x = jax.random.split(key)

    input_size, hidden_size, n_classes = 6, 32, 10
    batch, seq_len = 2, 8

    params = init_params(k_params, input_size, hidden_size, n_classes)
    padded = pad_params(params, input_size, hidden_size, n_classes)

    x = jax.random.normal(k_x, (batch, seq_len, input_size), jnp.float32)

    out = simple_sequence_classifier_forward(x, padded, n_classes)
    out = jax.block_until_ready(out)

    ref = lstm_classifier_ref(x, params)
    assert out.shape == (batch, n_classes)
    err = jnp.max(jnp.abs(out - ref))
    assert jnp.allclose(out, ref, atol=1e-4, rtol=1e-4), f"mismatch vs reference: {err}"

    print("KERNEL_OK")
</pallas_src>

<mosaic_0001>
module attributes {stable_mosaic.version = 11 : i64} {
  func.func @_lstm_cls_kernel(%arg0: i32, %arg1: memref<8x8x8xf32, #tpu.memory_space<vmem>>, %arg2: memref<8x512xf32, #tpu.memory_space<vmem>>, %arg3: memref<128x512xf32, #tpu.memory_space<vmem>>, %arg4: memref<1x512xf32, #tpu.memory_space<vmem>>, %arg5: memref<128x128xf32, #tpu.memory_space<vmem>>, %arg6: memref<1x128xf32, #tpu.memory_space<vmem>>, %arg7: memref<8x128xf32, #tpu.memory_space<vmem>>, %arg8: memref<64x512xf32, #tpu.memory_space<vmem>>) attributes {dimension_semantics = [#tpu.dimension_semantics<parallel>], iteration_bounds = array<i64: 1>, scalar_prefetch = 0 : i64, scratch_operands = 1 : i64, tpu.core_type = #tpu.core_type<tc>, window_params = [{transform_indices = @transform_0, window_bounds = array<i64: 8, 8, 8>}, {pipeline_mode = #tpu.pipeline_mode<synchronous>, transform_indices = @transform_1, window_bounds = array<i64: 8, 512>}, {pipeline_mode = #tpu.pipeline_mode<synchronous>, transform_indices = @transform_2, window_bounds = array<i64: 128, 512>}, {pipeline_mode = #tpu.pipeline_mode<synchronous>, transform_indices = @transform_3, window_bounds = array<i64: 1, 512>}, {pipeline_mode = #tpu.pipeline_mode<synchronous>, transform_indices = @transform_4, window_bounds = array<i64: 128, 128>}, {pipeline_mode = #tpu.pipeline_mode<synchronous>, transform_indices = @transform_5, window_bounds = array<i64: 1, 128>}, {transform_indices = @transform_6, window_bounds = array<i64: 8, 128>}]} {
    %c0 = arith.constant 0 : index
    %c0_0 = arith.constant 0 : index
    %c0_1 = arith.constant 0 : index
    %0 = vector.load %arg1[%c0, %c0_0, %c0_1] : memref<8x8x8xf32, #tpu.memory_space<vmem>>, vector<1x8x8xf32>
    %1 = vector.shape_cast %0 : vector<1x8x8xf32> to vector<8x8xf32>
    %c1 = arith.constant 1 : index
    %c0_2 = arith.constant 0 : index
    %c0_3 = arith.constant 0 : index
    %2 = vector.load %arg1[%c1, %c0_2, %c0_3] : memref<8x8x8xf32, #tpu.memory_space<vmem>>, vector<1x8x8xf32>
    %3 = vector.shape_cast %2 : vector<1x8x8xf32> to vector<8x8xf32>
    %c2 = arith.constant 2 : index
    %c0_4 = arith.constant 0 : index
    %c0_5 = arith.constant 0 : index
    %4 = vector.load %arg1[%c2, %c0_4, %c0_5] : memref<8x8x8xf32, #tpu.memory_space<vmem>>, vector<1x8x8xf32>
    %5 = vector.shape_cast %4 : vector<1x8x8xf32> to vector<8x8xf32>
    %c3 = arith.constant 3 : index
    %c0_6 = arith.constant 0 : index
    %c0_7 = arith.constant 0 : index
    %6 = vector.load %arg1[%c3, %c0_6, %c0_7] : memref<8x8x8xf32, #tpu.memory_space<vmem>>, vector<1x8x8xf32>
    %7 = vector.shape_cast %6 : vector<1x8x8xf32> to vector<8x8xf32>
    %c4 = arith.constant 4 : index
    %c0_8 = arith.constant 0 : index
    %c0_9 = arith.constant 0 : index
    %8 = vector.load %arg1[%c4, %c0_8, %c0_9] : memref<8x8x8xf32, #tpu.memory_space<vmem>>, vector<1x8x8xf32>
    %9 = vector.shape_cast %8 : vector<1x8x8xf32> to vector<8x8xf32>
    %c5 = arith.constant 5 : index
    %c0_10 = arith.constant 0 : index
    %c0_11 = arith.constant 0 : index
    %10 = vector.load %arg1[%c5, %c0_10, %c0_11] : memref<8x8x8xf32, #tpu.memory_space<vmem>>, vector<1x8x8xf32>
    %11 = vector.shape_cast %10 : vector<1x8x8xf32> to vector<8x8xf32>
    %c6 = arith.constant 6 : index
    %c0_12 = arith.constant 0 : index
    %c0_13 = arith.constant 0 : index
    %12 = vector.load %arg1[%c6, %c0_12, %c0_13] : memref<8x8x8xf32, #tpu.memory_space<vmem>>, vector<1x8x8xf32>
    %13 = vector.shape_cast %12 : vector<1x8x8xf32> to vector<8x8xf32>
    %c7 = arith.constant 7 : index
    %c0_14 = arith.constant 0 : index
    %c0_15 = arith.constant 0 : index
    %14 = vector.load %arg1[%c7, %c0_14, %c0_15] : memref<8x8x8xf32, #tpu.memory_space<vmem>>, vector<1x8x8xf32>
    %15 = vector.shape_cast %14 : vector<1x8x8xf32> to vector<8x8xf32>
    %16 = tpu.concatenate %1, %3, %5, %7, %9, %11, %13, %15 in 0 : vector<8x8xf32>, vector<8x8xf32>, vector<8x8xf32>, vector<8x8xf32>, vector<8x8xf32>, vector<8x8xf32>, vector<8x8xf32>, vector<8x8xf32> -> vector<64x8xf32>
    %c0_16 = arith.constant 0 : index
    %c0_17 = arith.constant 0 : index
    %17 = vector.load %arg2[%c0_16, %c0_17] : memref<8x512xf32, #tpu.memory_space<vmem>>, vector<8x512xf32>
    %cst = arith.constant dense<0.000000e+00> : vector<64x512xf32>
    %18 = tpu.matmul %16, %17, %cst {dimension_numbers = #tpu.dot_dimension_numbers<[1], [0], [0], [1], [0, 0, 1, 1], [], []>} : vector<64x8xf32>, vector<8x512xf32>, vector<64x512xf32> -> vector<64x512xf32>
    %c0_18 = arith.constant 0 : index
    %c0_19 = arith.constant 0 : index
    %19 = vector.load %arg4[%c0_18, %c0_19] : memref<1x512xf32, #tpu.memory_space<vmem>>, vector<1x512xf32>
    %20 = vector.broadcast %19 : vector<1x512xf32> to vector<64x512xf32>
    %21 = arith.addf %18, %20 : vector<64x512xf32>
    %c0_20 = arith.constant 0 : index
    %c0_21 = arith.constant 0 : index
    %22 = vector.load %arg8[%c0_20, %c0_21] : memref<64x512xf32, #tpu.memory_space<vmem>>, vector<64x512xf32>
    tpu.vector_store %arg8[%c0_20, %c0_21], %21 {strides = array<i32>} : memref<64x512xf32, #tpu.memory_space<vmem>>, vector<64x512xf32>,
    %c0_22 = arith.constant 0 : index
    %c0_23 = arith.constant 0 : index
    %23 = vector.load %arg3[%c0_22, %c0_23] : memref<128x512xf32, #tpu.memory_space<vmem>>, vector<128x512xf32>
    %cst_24 = arith.constant 0.000000e+00 : f32
    %24 = vector.broadcast %cst_24 : f32 to vector<8x128xf32>
    %cst_25 = arith.constant 0.000000e+00 : f32
    %25 = vector.broadcast %cst_25 : f32 to vector<8x128xf32>
    %c0_i32 = arith.constant 0 : i32
    %c8_i32 = arith.constant 8 : i32
    %26 = arith.muli %c0_i32, %c8_i32 : i32
    %27 = tpu.assume_multiple %26, 8 : i32
    %28 = arith.index_cast %27 : i32 to index
    %c0_26 = arith.constant 0 : index
    %29 = vector.load %arg8[%28, %c0_26] : memref<64x512xf32, #tpu.memory_space<vmem>>, vector<8x512xf32>
    %cst_27 = arith.constant dense<0.000000e+00> : vector<8x512xf32>
    %30 = tpu.matmul %24, %23, %cst_27 {dimension_numbers = #tpu.dot_dimension_numbers<[1], [0], [0], [1], [0, 0, 1, 1], [], []>} : vector<8x128xf32>, vector<128x512xf32>, vector<8x512xf32> -> vector<8x512xf32>
    %31 = arith.addf %29, %30 : vector<8x512xf32>
    %32 = vector.extract_strided_slice %31 {offsets = [0, 0], sizes = [8, 128], strides = [1, 1]} : vector<8x512xf32> to vector<8x128xf32>
    %cst_28 = arith.constant 5.000000e-01 : f32
    %33 = vector.broadcast %cst_28 : f32 to vector<8x128xf32>
    %34 = arith.mulf %33, %32 : vector<8x128xf32>
    %35 = math.tanh %34 : vector<8x128xf32>
    %cst_29 = arith.constant 1.000000e+00 : f32
    %36 = vector.broadcast %cst_29 : f32 to vector<8x128xf32>
    %37 = arith.addf %35, %36 : vector<8x128xf32>
    %cst_30 = arith.constant 5.000000e-01 : f32
    %38 = vector.broadcast %cst_30 : f32 to vector<8x128xf32>
    %39 = arith.mulf %38, %37 : vector<8x128xf32>
    %40 = vector.extract_strided_slice %31 {offsets = [0, 128], sizes = [8, 128], strides = [1, 1]} : vector<8x512xf32> to vector<8x128xf32>
    %cst_31 = arith.constant 5.000000e-01 : f32
    %41 = vector.broadcast %cst_31 : f32 to vector<8x128xf32>
    %42 = arith.mulf %41, %40 : vector<8x128xf32>
    %43 = math.tanh %42 : vector<8x128xf32>
    %cst_32 = arith.constant 1.000000e+00 : f32
    %44 = vector.broadcast %cst_32 : f32 to vector<8x128xf32>
    %45 = arith.addf %43, %44 : vector<8x128xf32>
    %cst_33 = arith.constant 5.000000e-01 : f32
    %46 = vector.broadcast %cst_33 : f32 to vector<8x128xf32>
    %47 = arith.mulf %46, %45 : vector<8x128xf32>
    %48 = vector.extract_strided_slice %31 {offsets = [0, 256], sizes = [8, 128], strides = [1, 1]} : vector<8x512xf32> to vector<8x128xf32>
    %49 = math.tanh %48 : vector<8x128xf32>
    %50 = vector.extract_strided_slice %31 {offsets = [0, 384], sizes = [8, 128], strides = [1, 1]} : vector<8x512xf32> to vector<8x128xf32>
    %cst_34 = arith.constant 5.000000e-01 : f32
    %51 = vector.broadcast %cst_34 : f32 to vector<8x128xf32>
    %52 = arith.mulf %51, %50 : vector<8x128xf32>
    %53 = math.tanh %52 : vector<8x128xf32>
    %cst_35 = arith.constant 1.000000e+00 : f32
    %54 = vector.broadcast %cst_35 : f32 to vector<8x128xf32>
    %55 = arith.addf %53, %54 : vector<8x128xf32>
    %cst_36 = arith.constant 5.000000e-01 : f32
    %56 = vector.broadcast %cst_36 : f32 to vector<8x128xf32>
    %57 = arith.mulf %56, %55 : vector<8x128xf32>
    %58 = arith.mulf %47, %25 : vector<8x128xf32>
    %59 = arith.mulf %39, %49 : vector<8x128xf32>
    %60 = arith.addf %58, %59 : vector<8x128xf32>
    %61 = math.tanh %60 : vector<8x128xf32>
    %62 = arith.mulf %57, %61 : vector<8x128xf32>
    %c1_i32 = arith.constant 1 : i32
    %c8_i32_37 = arith.constant 8 : i32
    %63 = arith.muli %c1_i32, %c8_i32_37 : i32
    %64 = tpu.assume_multiple %63, 8 : i32
    %65 = arith.index_cast %64 : i32 to index
    %c0_38 = arith.constant 0 : index
    %66 = vector.load %arg8[%65, %c0_38] : memref<64x512xf32, #tpu.memory_space<vmem>>, vector<8x512xf32>
    %cst_39 = arith.constant dense<0.000000e+00> : vector<8x512xf32>
    %67 = tpu.matmul %62, %23, %cst_39 {dimension_numbers = #tpu.dot_dimension_numbers<[1], [0], [0], [1], [0, 0, 1, 1], [], []>} : vector<8x128xf32>, vector<128x512xf32>, vector<8x512xf32> -> vector<8x512xf32>
    %68 = arith.addf %66, %67 : vector<8x512xf32>
    %69 = vector.extract_strided_slice %68 {offsets = [0, 0], sizes = [8, 128], strides = [1, 1]} : vector<8x512xf32> to vector<8x128xf32>
    %cst_40 = arith.constant 5.000000e-01 : f32
    %70 = vector.broadcast %cst_40 : f32 to vector<8x128xf32>
    %71 = arith.mulf %70, %69 : vector<8x128xf32>
    %72 = math.tanh %71 : vector<8x128xf32>
    %cst_41 = arith.constant 1.000000e+00 : f32
    %73 = vector.broadcast %cst_41 : f32 to vector<8x128xf32>
    %74 = arith.addf %72, %73 : vector<8x128xf32>
    %cst_42 = arith.constant 5.000000e-01 : f32
    %75 = vector.broadcast %cst_42 : f32 to vector<8x128xf32>
    %76 = arith.mulf %75, %74 : vector<8x128xf32>
    %77 = vector.extract_strided_slice %68 {offsets = [0, 128], sizes = [8, 128], strides = [1, 1]} : vector<8x512xf32> to vector<8x128xf32>
    %cst_43 = arith.constant 5.000000e-01 : f32
    %78 = vector.broadcast %cst_43 : f32 to vector<8x128xf32>
    %79 = arith.mulf %78, %77 : vector<8x128xf32>
    %80 = math.tanh %79 : vector<8x128xf32>
    %cst_44 = arith.constant 1.000000e+00 : f32
    %81 = vector.broadcast %cst_44 : f32 to vector<8x128xf32>
    %82 = arith.addf %80, %81 : vector<8x128xf32>
    %cst_45 = arith.constant 5.000000e-01 : f32
    %83 = vector.broadcast %cst_45 : f32 to vector<8x128xf32>
    %84 = arith.mulf %83, %82 : vector<8x128xf32>
    %85 = vector.extract_strided_slice %68 {offsets = [0, 256], sizes = [8, 128], strides = [1, 1]} : vector<8x512xf32> to vector<8x128xf32>
    %86 = math.tanh %85 : vector<8x128xf32>
    %87 = vector.extract_strided_slice %68 {offsets = [0, 384], sizes = [8, 128], strides = [1, 1]} : vector<8x512xf32> to vector<8x128xf32>
    %cst_46 = arith.constant 5.000000e-01 : f32
    %88 = vector.broadcast %cst_46 : f32 to vector<8x128xf32>
    %89 = arith.mulf %88, %87 : vector<8x128xf32>
    %90 = math.tanh %89 : vector<8x128xf32>
    %cst_47 = arith.constant 1.000000e+00 : f32
    %91 = vector.broadcast %cst_47 : f32 to vector<8x128xf32>
    %92 = arith.addf %90, %91 : vector<8x128xf32>
    %cst_48 = arith.constant 5.000000e-01 : f32
    %93 = vector.broadcast %cst_48 : f32 to vector<8x128xf32>
    %94 = arith.mulf %93, %92 : vector<8x128xf32>
    %95 = arith.mulf %84, %60 : vector<8x128xf32>
    %96 = arith.mulf %76, %86 : vector<8x128xf32>
    %97 = arith.addf %95, %96 : vector<8x128xf32>
    %98 = math.tanh %97 : vector<8x128xf32>
    %99 = arith.mulf %94, %98 : vector<8x128xf32>
    %c2_i32 = arith.constant 2 : i32
    %c8_i32_49 = arith.constant 8 : i32
    %100 = arith.muli %c2_i32, %c8_i32_49 : i32
    %101 = tpu.assume_multiple %100, 8 : i32
    %102 = arith.index_cast %101 : i32 to index
    %c0_50 = arith.constant 0 : index
    %103 = vector.load %arg8[%102, %c0_50] : memref<64x512xf32, #tpu.memory_space<vmem>>, vector<8x512xf32>
    %cst_51 = arith.constant dense<0.000000e+00> : vector<8x512xf32>
    %104 = tpu.matmul %99, %23, %cst_51 {dimension_numbers = #tpu.dot_dimension_numbers<[1], [0], [0], [1], [0, 0, 1, 1], [], []>} : vector<8x128xf32>, vector<128x512xf32>, vector<8x512xf32> -> vector<8x512xf32>
    %105 = arith.addf %103, %104 : vector<8x512xf32>
    %106 = vector.extract_strided_slice %105 {offsets = [0, 0], sizes = [8, 128], strides = [1, 1]} : vector<8x512xf32> to vector<8x128xf32>
    %cst_52 = arith.constant 5.000000e-01 : f32
    %107 = vector.broadcast %cst_52 : f32 to vector<8x128xf32>
    %108 = arith.mulf %107, %106 : vector<8x128xf32>
    %109 = math.tanh %108 : vector<8x128xf32>
    %cst_53 = arith.constant 1.000000e+00 : f32
    %110 = vector.broadcast %cst_53 : f32 to vector<8x128xf32>
    %111 = arith.addf %109, %110 : vector<8x128xf32>
    %cst_54 = arith.constant 5.000000e-01 : f32
    %112 = vector.broadcast %cst_54 : f32 to vector<8x128xf32>
    %113 = arith.mulf %112, %111 : vector<8x128xf32>
    %114 = vector.extract_strided_slice %105 {offsets = [0, 128], sizes = [8, 128], strides = [1, 1]} : vector<8x512xf32> to vector<8x128xf32>
    %cst_55 = arith.constant 5.000000e-01 : f32
    %115 = vector.broadcast %cst_55 : f32 to vector<8x128xf32>
    %116 = arith.mulf %115, %114 : vector<8x128xf32>
    %117 = math.tanh %116 : vector<8x128xf32>
    %cst_56 = arith.constant 1.000000e+00 : f32
    %118 = vector.broadcast %cst_56 : f32 to vector<8x128xf32>
    %119 = arith.addf %117, %118 : vector<8x128xf32>
    %cst_57 = arith.constant 5.000000e-01 : f32
    %120 = vector.broadcast %cst_57 : f32 to vector<8x128xf32>
    %121 = arith.mulf %120, %119 : vector<8x128xf32>
    %122 = vector.extract_strided_slice %105 {offsets = [0, 256], sizes = [8, 128], strides = [1, 1]} : vector<8x512xf32> to vector<8x128xf32>
    %123 = math.tanh %122 : vector<8x128xf32>
    %124 = vector.extract_strided_slice %105 {offsets = [0, 384], sizes = [8, 128], strides = [1, 1]} : vector<8x512xf32> to vector<8x128xf32>
    %cst_58 = arith.constant 5.000000e-01 : f32
    %125 = vector.broadcast %cst_58 : f32 to vector<8x128xf32>
    %126 = arith.mulf %125, %124 : vector<8x128xf32>
    %127 = math.tanh %126 : vector<8x128xf32>
    %cst_59 = arith.constant 1.000000e+00 : f32
    %128 = vector.broadcast %cst_59 : f32 to vector<8x128xf32>
    %129 = arith.addf %127, %128 : vector<8x128xf32>
    %cst_60 = arith.constant 5.000000e-01 : f32
    %130 = vector.broadcast %cst_60 : f32 to vector<8x128xf32>
    %131 = arith.mulf %130, %129 : vector<8x128xf32>
    %132 = arith.mulf %121, %97 : vector<8x128xf32>
    %133 = arith.mulf %113, %123 : vector<8x128xf32>
    %134 = arith.addf %132, %133 : vector<8x128xf32>
    %135 = math.tanh %134 : vector<8x128xf32>
    %136 = arith.mulf %131, %135 : vector<8x128xf32>
    %c3_i32 = arith.constant 3 : i32
    %c8_i32_61 = arith.constant 8 : i32
    %137 = arith.muli %c3_i32, %c8_i32_61 : i32
    %138 = tpu.assume_multiple %137, 8 : i32
    %139 = arith.index_cast %138 : i32 to index
    %c0_62 = arith.constant 0 : index
    %140 = vector.load %arg8[%139, %c0_62] : memref<64x512xf32, #tpu.memory_space<vmem>>, vector<8x512xf32>
    %cst_63 = arith.constant dense<0.000000e+00> : vector<8x512xf32>
    %141 = tpu.matmul %136, %23, %cst_63 {dimension_numbers = #tpu.dot_dimension_numbers<[1], [0], [0], [1], [0, 0, 1, 1], [], []>} : vector<8x128xf32>, vector<128x512xf32>, vector<8x512xf32> -> vector<8x512xf32>
    %142 = arith.addf %140, %141 : vector<8x512xf32>
    %143 = vector.extract_strided_slice %142 {offsets = [0, 0], sizes = [8, 128], strides = [1, 1]} : vector<8x512xf32> to vector<8x128xf32>
    %cst_64 = arith.constant 5.000000e-01 : f32
    %144 = vector.broadcast %cst_64 : f32 to vector<8x128xf32>
    %145 = arith.mulf %144, %143 : vector<8x128xf32>
    %146 = math.tanh %145 : vector<8x128xf32>
    %cst_65 = arith.constant 1.000000e+00 : f32
    %147 = vector.broadcast %cst_65 : f32 to vector<8x128xf32>
    %148 = arith.addf %146, %147 : vector<8x128xf32>
    %cst_66 = arith.constant 5.000000e-01 : f32
    %149 = vector.broadcast %cst_66 : f32 to vector<8x128xf32>
    %150 = arith.mulf %149, %148 : vector<8x128xf32>
    %151 = vector.extract_strided_slice %142 {offsets = [0, 128], sizes = [8, 128], strides = [1, 1]} : vector<8x512xf32> to vector<8x128xf32>
    %cst_67 = arith.constant 5.000000e-01 : f32
    %152 = vector.broadcast %cst_67 : f32 to vector<8x128xf32>
    %153 = arith.mulf %152, %151 : vector<8x128xf32>
    %154 = math.tanh %153 : vector<8x128xf32>
    %cst_68 = arith.constant 1.000000e+00 : f32
    %155 = vector.broadcast %cst_68 : f32 to vector<8x128xf32>
    %156 = arith.addf %154, %155 : vector<8x128xf32>
    %cst_69 = arith.constant 5.000000e-01 : f32
    %157 = vector.broadcast %cst_69 : f32 to vector<8x128xf32>
    %158 = arith.mulf %157, %156 : vector<8x128xf32>
    %159 = vector.extract_strided_slice %142 {offsets = [0, 256], sizes = [8, 128], strides = [1, 1]} : vector<8x512xf32> to vector<8x128xf32>
    %160 = math.tanh %159 : vector<8x128xf32>
    %161 = vector.extract_strided_slice %142 {offsets = [0, 384], sizes = [8, 128], strides = [1, 1]} : vector<8x512xf32> to vector<8x128xf32>
    %cst_70 = arith.constant 5.000000e-01 : f32
    %162 = vector.broadcast %cst_70 : f32 to vector<8x128xf32>
    %163 = arith.mulf %162, %161 : vector<8x128xf32>
    %164 = math.tanh %163 : vector<8x128xf32>
    %cst_71 = arith.constant 1.000000e+00 : f32
    %165 = vector.broadcast %cst_71 : f32 to vector<8x128xf32>
    %166 = arith.addf %164, %165 : vector<8x128xf32>
    %cst_72 = arith.constant 5.000000e-01 : f32
    %167 = vector.broadcast %cst_72 : f32 to vector<8x128xf32>
    %168 = arith.mulf %167, %166 : vector<8x128xf32>
    %169 = arith.mulf %158, %134 : vector<8x128xf32>
    %170 = arith.mulf %150, %160 : vector<8x128xf32>
    %171 = arith.addf %169, %170 : vector<8x128xf32>
    %172 = math.tanh %171 : vector<8x128xf32>
    %173 = arith.mulf %168, %172 : vector<8x128xf32>
    %c4_i32 = arith.constant 4 : i32
    %c8_i32_73 = arith.constant 8 : i32
    %174 = arith.muli %c4_i32, %c8_i32_73 : i32
    %175 = tpu.assume_multiple %174, 8 : i32
    %176 = arith.index_cast %175 : i32 to index
    %c0_74 = arith.constant 0 : index
    %177 = vector.load %arg8[%176, %c0_74] : memref<64x512xf32, #tpu.memory_space<vmem>>, vector<8x512xf32>
    %cst_75 = arith.constant dense<0.000000e+00> : vector<8x512xf32>
    %178 = tpu.matmul %173, %23, %cst_75 {dimension_numbers = #tpu.dot_dimension_numbers<[1], [0], [0], [1], [0, 0, 1, 1], [], []>} : vector<8x128xf32>, vector<128x512xf32>, vector<8x512xf32> -> vector<8x512xf32>
    %179 = arith.addf %177, %178 : vector<8x512xf32>
    %180 = vector.extract_strided_slice %179 {offsets = [0, 0], sizes = [8, 128], strides = [1, 1]} : vector<8x512xf32> to vector<8x128xf32>
    %cst_76 = arith.constant 5.000000e-01 : f32
    %181 = vector.broadcast %cst_76 : f32 to vector<8x128xf32>
    %182 = arith.mulf %181, %180 : vector<8x128xf32>
    %183 = math.tanh %182 : vector<8x128xf32>
    %cst_77 = arith.constant 1.000000e+00 : f32
    %184 = vector.broadcast %cst_77 : f32 to vector<8x128xf32>
    %185 = arith.addf %183, %184 : vector<8x128xf32>
    %cst_78 = arith.constant 5.000000e-01 : f32
    %186 = vector.broadcast %cst_78 : f32 to vector<8x128xf32>
    %187 = arith.mulf %186, %185 : vector<8x128xf32>
    %188 = vector.extract_strided_slice %179 {offsets = [0, 128], sizes = [8, 128], strides = [1, 1]} : vector<8x512xf32> to vector<8x128xf32>
    %cst_79 = arith.constant 5.000000e-01 : f32
    %189 = vector.broadcast %cst_79 : f32 to vector<8x128xf32>
    %190 = arith.mulf %189, %188 : vector<8x128xf32>
    %191 = math.tanh %190 : vector<8x128xf32>
    %cst_80 = arith.constant 1.000000e+00 : f32
    %192 = vector.broadcast %cst_80 : f32 to vector<8x128xf32>
    %193 = arith.addf %191, %192 : vector<8x128xf32>
    %cst_81 = arith.constant 5.000000e-01 : f32
    %194 = vector.broadcast %cst_81 : f32 to vector<8x128xf32>
    %195 = arith.mulf %194, %193 : vector<8x128xf32>
    %196 = vector.extract_strided_slice %179 {offsets = [0, 256], sizes = [8, 128], strides = [1, 1]} : vector<8x512xf32> to vector<8x128xf32>
    %197 = math.tanh %196 : vector<8x128xf32>
    %198 = vector.extract_strided_slice %179 {offsets = [0, 384], sizes = [8, 128], strides = [1, 1]} : vector<8x512xf32> to vector<8x128xf32>
    %cst_82 = arith.constant 5.000000e-01 : f32
    %199 = vector.broadcast %cst_82 : f32 to vector<8x128xf32>
    %200 = arith.mulf %199, %198 : vector<8x128xf32>
    %201 = math.tanh %200 : vector<8x128xf32>
    %cst_83 = arith.constant 1.000000e+00 : f32
    %202 = vector.broadcast %cst_83 : f32 to vector<8x128xf32>
    %203 = arith.addf %201, %202 : vector<8x128xf32>
    %cst_84 = arith.constant 5.000000e-01 : f32
    %204 = vector.broadcast %cst_84 : f32 to vector<8x128xf32>
    %205 = arith.mulf %204, %203 : vector<8x128xf32>
    %206 = arith.mulf %195, %171 : vector<8x128xf32>
    %207 = arith.mulf %187, %197 : vector<8x128xf32>
    %208 = arith.addf %206, %207 : vector<8x128xf32>
    %209 = math.tanh %208 : vector<8x128xf32>
    %210 = arith.mulf %205, %209 : vector<8x128xf32>
    %c5_i32 = arith.constant 5 : i32
    %c8_i32_85 = arith.constant 8 : i32
    %211 = arith.muli %c5_i32, %c8_i32_85 : i32
    %212 = tpu.assume_multiple %211, 8 : i32
    %213 = arith.index_cast %212 : i32 to index
    %c0_86 = arith.constant 0 : index
    %214 = vector.load %arg8[%213, %c0_86] : memref<64x512xf32, #tpu.memory_space<vmem>>, vector<8x512xf32>
    %cst_87 = arith.constant dense<0.000000e+00> : vector<8x512xf32>
    %215 = tpu.matmul %210, %23, %cst_87 {dimension_numbers = #tpu.dot_dimension_numbers<[1], [0], [0], [1], [0, 0, 1, 1], [], []>} : vector<8x128xf32>, vector<128x512xf32>, vector<8x512xf32> -> vector<8x512xf32>
    %216 = arith.addf %214, %215 : vector<8x512xf32>
    %217 = vector.extract_strided_slice %216 {offsets = [0, 0], sizes = [8, 128], strides = [1, 1]} : vector<8x512xf32> to vector<8x128xf32>
    %cst_88 = arith.constant 5.000000e-01 : f32
    %218 = vector.broadcast %cst_88 : f32 to vector<8x128xf32>
    %219 = arith.mulf %218, %217 : vector<8x128xf32>
    %220 = math.tanh %219 : vector<8x128xf32>
    %cst_89 = arith.constant 1.000000e+00 : f32
    %221 = vector.broadcast %cst_89 : f32 to vector<8x128xf32>
    %222 = arith.addf %220, %221 : vector<8x128xf32>
    %cst_90 = arith.constant 5.000000e-01 : f32
    %223 = vector.broadcast %cst_90 : f32 to vector<8x128xf32>
    %224 = arith.mulf %223, %222 : vector<8x128xf32>
    %225 = vector.extract_strided_slice %216 {offsets = [0, 128], sizes = [8, 128], strides = [1, 1]} : vector<8x512xf32> to vector<8x128xf32>
    %cst_91 = arith.constant 5.000000e-01 : f32
    %226 = vector.broadcast %cst_91 : f32 to vector<8x128xf32>
    %227 = arith.mulf %226, %225 : vector<8x128xf32>
    %228 = math.tanh %227 : vector<8x128xf32>
    %cst_92 = arith.constant 1.000000e+00 : f32
    %229 = vector.broadcast %cst_92 : f32 to vector<8x128xf32>
    %230 = arith.addf %228, %229 : vector<8x128xf32>
    %cst_93 = arith.constant 5.000000e-01 : f32
    %231 = vector.broadcast %cst_93 : f32 to vector<8x128xf32>
    %232 = arith.mulf %231, %230 : vector<8x128xf32>
    %233 = vector.extract_strided_slice %216 {offsets = [0, 256], sizes = [8, 128], strides = [1, 1]} : vector<8x512xf32> to vector<8x128xf32>
    %234 = math.tanh %233 : vector<8x128xf32>
    %235 = vector.extract_strided_slice %216 {offsets = [0, 384], sizes = [8, 128], strides = [1, 1]} : vector<8x512xf32> to vector<8x128xf32>
    %cst_94 = arith.constant 5.000000e-01 : f32
    %236 = vector.broadcast %cst_94 : f32 to vector<8x128xf32>
    %237 = arith.mulf %236, %235 : vector<8x128xf32>
    %238 = math.tanh %237 : vector<8x128xf32>
    %cst_95 = arith.constant 1.000000e+00 : f32
    %239 = vector.broadcast %cst_95 : f32 to vector<8x128xf32>
    %240 = arith.addf %238, %239 : vector<8x128xf32>
    %cst_96 = arith.constant 5.000000e-01 : f32
    %241 = vector.broadcast %cst_96 : f32 to vector<8x128xf32>
    %242 = arith.mulf %241, %240 : vector<8x128xf32>
    %243 = arith.mulf %232, %208 : vector<8x128xf32>
    %244 = arith.mulf %224, %234 : vector<8x128xf32>
    %245 = arith.addf %243, %244 : vector<8x128xf32>
    %246 = math.tanh %245 : vector<8x128xf32>
    %247 = arith.mulf %242, %246 : vector<8x128xf32>
    %c6_i32 = arith.constant 6 : i32
    %c8_i32_97 = arith.constant 8 : i32
    %248 = arith.muli %c6_i32, %c8_i32_97 : i32
    %249 = tpu.assume_multiple %248, 8 : i32
    %250 = arith.index_cast %249 : i32 to index
    %c0_98 = arith.constant 0 : index
    %251 = vector.load %arg8[%250, %c0_98] : memref<64x512xf32, #tpu.memory_space<vmem>>, vector<8x512xf32>
    %cst_99 = arith.constant dense<0.000000e+00> : vector<8x512xf32>
    %252 = tpu.matmul %247, %23, %cst_99 {dimension_numbers = #tpu.dot_dimension_numbers<[1], [0], [0], [1], [0, 0, 1, 1], [], []>} : vector<8x128xf32>, vector<128x512xf32>, vector<8x512xf32> -> vector<8x512xf32>
    %253 = arith.addf %251, %252 : vector<8x512xf32>
    %254 = vector.extract_strided_slice %253 {offsets = [0, 0], sizes = [8, 128], strides = [1, 1]} : vector<8x512xf32> to vector<8x128xf32>
    %cst_100 = arith.constant 5.000000e-01 : f32
    %255 = vector.broadcast %cst_100 : f32 to vector<8x128xf32>
    %256 = arith.mulf %255, %254 : vector<8x128xf32>
    %257 = math.tanh %256 : vector<8x128xf32>
    %cst_101 = arith.constant 1.000000e+00 : f32
    %258 = vector.broadcast %cst_101 : f32 to vector<8x128xf32>
    %259 = arith.addf %257, %258 : vector<8x128xf32>
    %cst_102 = arith.constant 5.000000e-01 : f32
    %260 = vector.broadcast %cst_102 : f32 to vector<8x128xf32>
    %261 = arith.mulf %260, %259 : vector<8x128xf32>
    %262 = vector.extract_strided_slice %253 {offsets = [0, 128], sizes = [8, 128], strides = [1, 1]} : vector<8x512xf32> to vector<8x128xf32>
    %cst_103 = arith.constant 5.000000e-01 : f32
    %263 = vector.broadcast %cst_103 : f32 to vector<8x128xf32>
    %264 = arith.mulf %263, %262 : vector<8x128xf32>
    %265 = math.tanh %264 : vector<8x128xf32>
    %cst_104 = arith.constant 1.000000e+00 : f32
    %266 = vector.broadcast %cst_104 : f32 to vector<8x128xf32>
    %267 = arith.addf %265, %266 : vector<8x128xf32>
    %cst_105 = arith.constant 5.000000e-01 : f32
    %268 = vector.broadcast %cst_105 : f32 to vector<8x128xf32>
    %269 = arith.mulf %268, %267 : vector<8x128xf32>
    %270 = vector.extract_strided_slice %253 {offsets = [0, 256], sizes = [8, 128], strides = [1, 1]} : vector<8x512xf32> to vector<8x128xf32>
    %271 = math.tanh %270 : vector<8x128xf32>
    %272 = vector.extract_strided_slice %253 {offsets = [0, 384], sizes = [8, 128], strides = [1, 1]} : vector<8x512xf32> to vector<8x128xf32>
    %cst_106 = arith.constant 5.000000e-01 : f32
    %273 = vector.broadcast %cst_106 : f32 to vector<8x128xf32>
    %274 = arith.mulf %273, %272 : vector<8x128xf32>
    %275 = math.tanh %274 : vector<8x128xf32>
    %cst_107 = arith.constant 1.000000e+00 : f32
    %276 = vector.broadcast %cst_107 : f32 to vector<8x128xf32>
    %277 = arith.addf %275, %276 : vector<8x128xf32>
    %cst_108 = arith.constant 5.000000e-01 : f32
    %278 = vector.broadcast %cst_108 : f32 to vector<8x128xf32>
    %279 = arith.mulf %278, %277 : vector<8x128xf32>
    %280 = arith.mulf %269, %245 : vector<8x128xf32>
    %281 = arith.mulf %261, %271 : vector<8x128xf32>
    %282 = arith.addf %280, %281 : vector<8x128xf32>
    %283 = math.tanh %282 : vector<8x128xf32>
    %284 = arith.mulf %279, %283 : vector<8x128xf32>
    %c7_i32 = arith.constant 7 : i32
    %c8_i32_109 = arith.constant 8 : i32
    %285 = arith.muli %c7_i32, %c8_i32_109 : i32
    %286 = tpu.assume_multiple %285, 8 : i32
    %287 = arith.index_cast %286 : i32 to index
    %c0_110 = arith.constant 0 : index
    %288 = vector.load %arg8[%287, %c0_110] : memref<64x512xf32, #tpu.memory_space<vmem>>, vector<8x512xf32>
    %cst_111 = arith.constant dense<0.000000e+00> : vector<8x512xf32>
    %289 = tpu.matmul %284, %23, %cst_111 {dimension_numbers = #tpu.dot_dimension_numbers<[1], [0], [0], [1], [0, 0, 1, 1], [], []>} : vector<8x128xf32>, vector<128x512xf32>, vector<8x512xf32> -> vector<8x512xf32>
    %290 = arith.addf %288, %289 : vector<8x512xf32>
    %291 = vector.extract_strided_slice %290 {offsets = [0, 0], sizes = [8, 128], strides = [1, 1]} : vector<8x512xf32> to vector<8x128xf32>
    %cst_112 = arith.constant 5.000000e-01 : f32
    %292 = vector.broadcast %cst_112 : f32 to vector<8x128xf32>
    %293 = arith.mulf %292, %291 : vector<8x128xf32>
    %294 = math.tanh %293 : vector<8x128xf32>
    %cst_113 = arith.constant 1.000000e+00 : f32
    %295 = vector.broadcast %cst_113 : f32 to vector<8x128xf32>
    %296 = arith.addf %294, %295 : vector<8x128xf32>
    %cst_114 = arith.constant 5.000000e-01 : f32
    %297 = vector.broadcast %cst_114 : f32 to vector<8x128xf32>
    %298 = arith.mulf %297, %296 : vector<8x128xf32>
    %299 = vector.extract_strided_slice %290 {offsets = [0, 128], sizes = [8, 128], strides = [1, 1]} : vector<8x512xf32> to vector<8x128xf32>
    %cst_115 = arith.constant 5.000000e-01 : f32
    %300 = vector.broadcast %cst_115 : f32 to vector<8x128xf32>
    %301 = arith.mulf %300, %299 : vector<8x128xf32>
    %302 = math.tanh %301 : vector<8x128xf32>
    %cst_116 = arith.constant 1.000000e+00 : f32
    %303 = vector.broadcast %cst_116 : f32 to vector<8x128xf32>
    %304 = arith.addf %302, %303 : vector<8x128xf32>
    %cst_117 = arith.constant 5.000000e-01 : f32
    %305 = vector.broadcast %cst_117 : f32 to vector<8x128xf32>
    %306 = arith.mulf %305, %304 : vector<8x128xf32>
    %307 = vector.extract_strided_slice %290 {offsets = [0, 256], sizes = [8, 128], strides = [1, 1]} : vector<8x512xf32> to vector<8x128xf32>
    %308 = math.tanh %307 : vector<8x128xf32>
    %309 = vector.extract_strided_slice %290 {offsets = [0, 384], sizes = [8, 128], strides = [1, 1]} : vector<8x512xf32> to vector<8x128xf32>
    %cst_118 = arith.constant 5.000000e-01 : f32
    %310 = vector.broadcast %cst_118 : f32 to vector<8x128xf32>
    %311 = arith.mulf %310, %309 : vector<8x128xf32>
    %312 = math.tanh %311 : vector<8x128xf32>
    %cst_119 = arith.constant 1.000000e+00 : f32
    %313 = vector.broadcast %cst_119 : f32 to vector<8x128xf32>
    %314 = arith.addf %312, %313 : vector<8x128xf32>
    %cst_120 = arith.constant 5.000000e-01 : f32
    %315 = vector.broadcast %cst_120 : f32 to vector<8x128xf32>
    %316 = arith.mulf %315, %314 : vector<8x128xf32>
    %317 = arith.mulf %306, %282 : vector<8x128xf32>
    %318 = arith.mulf %298, %308 : vector<8x128xf32>
    %319 = arith.addf %317, %318 : vector<8x128xf32>
    %320 = math.tanh %319 : vector<8x128xf32>
    %321 = arith.mulf %316, %320 : vector<8x128xf32>
    %c8_i32_121 = arith.constant 8 : i32
    %c0_122 = arith.constant 0 : index
    %c0_123 = arith.constant 0 : index
    %322 = vector.load %arg5[%c0_122, %c0_123] : memref<128x128xf32, #tpu.memory_space<vmem>>, vector<128x128xf32>
    %cst_124 = arith.constant dense<0.000000e+00> : vector<8x128xf32>
    %323 = tpu.matmul %321, %322, %cst_124 {dimension_numbers = #tpu.dot_dimension_numbers<[1], [0], [0], [1], [0, 0, 1, 1], [], []>} : vector<8x128xf32>, vector<128x128xf32>, vector<8x128xf32> -> vector<8x128xf32>
    %c0_125 = arith.constant 0 : index
    %c0_126 = arith.constant 0 : index
    %324 = vector.load %arg6[%c0_125, %c0_126] : memref<1x128xf32, #tpu.memory_space<vmem>>, vector<1x128xf32>
    %325 = vector.broadcast %324 : vector<1x128xf32> to vector<8x128xf32>
    %326 = arith.addf %323, %325 : vector<8x128xf32>
    %c0_127 = arith.constant 0 : index
    %c0_128 = arith.constant 0 : index
    %327 = vector.load %arg7[%c0_127, %c0_128] : memref<8x128xf32, #tpu.memory_space<vmem>>, vector<8x128xf32>
    tpu.vector_store %arg7[%c0_127, %c0_128], %326 {strides = array<i32>} : memref<8x128xf32, #tpu.memory_space<vmem>>, vector<8x128xf32>,
    return
  }
  func.func @transform_0(%arg0: i32) -> (i32, i32, i32) {
    %c0_i32 = arith.constant 0 : i32
    %c0_i32_0 = arith.constant 0 : i32
    %c0_i32_1 = arith.constant 0 : i32
    return %c0_i32, %arg0, %c0_i32_0 : i32, i32, i32
  }
  func.func @transform_1(%arg0: i32) -> (i32, i32) {
    %c0_i32 = arith.constant 0 : i32
    %c0_i32_0 = arith.constant 0 : i32
    %c0_i32_1 = arith.constant 0 : i32
    return %c0_i32, %c0_i32_0 : i32, i32
  }
  func.func @transform_2(%arg0: i32) -> (i32, i32) {
    %c0_i32 = arith.constant 0 : i32
    %c0_i32_0 = arith.constant 0 : i32
    %c0_i32_1 = arith.constant 0 : i32
    return %c0_i32, %c0_i32_0 : i32, i32
  }
  func.func @transform_3(%arg0: i32) -> (i32, i32) {
    %c0_i32 = arith.constant 0 : i32
    %c0_i32_0 = arith.constant 0 : i32
    %c0_i32_1 = arith.constant 0 : i32
    return %c0_i32, %c0_i32_0 : i32, i32
  }
  func.func @transform_4(%arg0: i32) -> (i32, i32) {
    %c0_i32 = arith.constant 0 : i32
    %c0_i32_0 = arith.constant 0 : i32
    %c0_i32_1 = arith.constant 0 : i32
    return %c0_i32, %c0_i32_0 : i32, i32
  }
  func.func @transform_5(%arg0: i32) -> (i32, i32) {
    %c0_i32 = arith.constant 0 : i32
    %c0_i32_0 = arith.constant 0 : i32
    %c0_i32_1 = arith.constant 0 : i32
    return %c0_i32, %c0_i32_0 : i32, i32
  }
  func.func @transform_6(%arg0: i32) -> (i32, i32) {
    %c0_i32 = arith.constant 0 : i32
    %c0_i32_0 = arith.constant 0 : i32
    return %arg0, %c0_i32 : i32, i32
  }
}

</mosaic_0001>

<llo_original>
// kernel: tpu_custom_call.1
$region0: #{tpu_custom_call.1}
  #allocation0 [shape = 'u32[]', space=smem, size = 0x4, offset = 0x4, fixed_abs, tag = 'smem constant byte address 0x4 - core index']
  #allocation1 [shape = 'u32[72,128]{1,0:T(1,128)}', space=vmem, size = 0x9000, scoped, tag = 'internal scratch']
  #allocation2 [shape = 'f32[64,512]{1,0:T(8,128)}', space=vmem, size = 0x20000, scoped, tag = 'scratch operand']
  %s0 = inlined_call_operand.hbm [shape: f32[8,8,8], index: 0, kind: input, shape index: {}]
  %s1 = inlined_call_operand.hbm [shape: f32[8,512], index: 1, kind: input, shape index: {}]
  %s2 = inlined_call_operand.hbm [shape: f32[128,512], index: 2, kind: input, shape index: {}]
  %s3 = inlined_call_operand.hbm [shape: f32[1,512], index: 3, kind: input, shape index: {}]
  %s4 = inlined_call_operand.hbm [shape: f32[128,128], index: 4, kind: input, shape index: {}]
  %s5 = inlined_call_operand.vmem [shape: f32[1,128], index: 5, kind: input, shape index: {}]
  %s6 = inlined_call_operand.hbm [shape: f32[8,128], index: 6, kind: output, shape index: {}]
  %s7 = sld [smem:[#allocation0]]
  $region54: #{tpu_custom_call.1} parent=0
    _
  %s9 = ssub.s32 1, %s7
  %s10 = scalar_select 0, %s9, %s7
  $region1: #{tpu_custom_call.1} parent=0
    #allocation3 [shape = 'u8[32768]{0}', space=vmem, size = 0x8000, scoped, tag = 'input window, operand 0, single buffered']
    #allocation4 [shape = 's32[1]{0}', space=sflag, size = 0x4, scoped, tag = 'scoped memory for tpu_custom_call.1']
    #allocation5 [shape = 's32[1]{0}', space=sflag, size = 0x4, scoped, tag = 'scoped memory for tpu_custom_call.1']
    #allocation6 [shape = 'u8[16384]{0}', space=vmem, size = 0x4000, scoped, tag = 'input window, operand 1, single buffered']
    #allocation7 [shape = 's32[1]{0}', space=sflag, size = 0x4, scoped, tag = 'scoped memory for tpu_custom_call.1']
    #allocation8 [shape = 'u8[262144]{0}', space=vmem, size = 0x40000, scoped, tag = 'input window, operand 2, single buffered']
    #allocation9 [shape = 'u8[2048]{0}', space=vmem, size = 0x800, scoped, tag = 'input window, operand 3, single buffered']
    #allocation10 [shape = 's32[1]{0}', space=sflag, size = 0x4, scoped, tag = 'scoped memory for tpu_custom_call.1']
    #allocation11 [shape = 'u8[65536]{0}', space=vmem, size = 0x10000, scoped, tag = 'input window, operand 4, single buffered']
    #allocation12 [shape = 'u8[4096]{0}', space=vmem, size = 0x1000, scoped, tag = 'output window, operand 0, single buffered']
    %11 = vsyncpa [#allocation4], 0
    %12 = vsyncpa [#allocation7], 0
    %13 = vsyncpa [#allocation10], 0
    %14 = vsyncpa [#allocation5], 0
    // Predicated region
    $region2: #{tpu_custom_call.1} parent=1 // pred_check
      _
    $region3: #{tpu_custom_call.1} parent=1 // pred_check_branch
      %16 = sbr.rel (0) target = $region5
    $region4: #{tpu_custom_call.1} parent=1 // pred_region
      %18 = vsyncadd [#allocation4], 0
      %s19 = sshll.u32 %s0, 4
      %s20 = int_to_ptr.hbm [resolvable:$true] %s19
      %s21 = sshll.u32 [#allocation3], 4
      %s22 = int_to_ptr.vmem [resolvable:$true] %s21
      %27 = dma.hbm_to_vmem [thread:$0]  %s20, 1024, %s22, [#allocation4], 128, 128, 8
    $region5: #{tpu_custom_call.1} parent=1 // pred_fallthru
      _
    // Predicated region
    $region6: #{tpu_custom_call.1} parent=1 // pred_check
      _
    $region7: #{tpu_custom_call.1} parent=1 // pred_check_branch
      %29 = sbr.rel (0) target = $region9
    $region8: #{tpu_custom_call.1} parent=1 // pred_region
      %31 = vsyncadd [#allocation7], 0
      %s33 = sshll.u32 %s1, 4
      %s34 = int_to_ptr.hbm [resolvable:$true] %s33
      %s35 = sshll.u32 [#allocation6], 4
      %s36 = int_to_ptr.vmem [resolvable:$true] %s35
      %38 = dma.hbm_to_vmem [thread:$0]  %s34, 512, %s36, [#allocation7]
    $region9: #{tpu_custom_call.1} parent=1 // pred_fallthru
      _
    // Predicated region
    $region10: #{tpu_custom_call.1} parent=1 // pred_check
      _
    $region11: #{tpu_custom_call.1} parent=1 // pred_check_branch
      %40 = sbr.rel (0) target = $region13
    $region12: #{tpu_custom_call.1} parent=1 // pred_region
      %42 = vsyncadd [#allocation7], 0
      %s43 = sshll.u32 %s2, 4
      %s44 = int_to_ptr.hbm [resolvable:$true] %s43
      %s45 = sshll.u32 [#allocation8], 4
      %s46 = int_to_ptr.vmem [resolvable:$true] %s45
      %51 = dma.hbm_to_vmem [thread:$0]  %s44, 8192, %s46, [#allocation7], 512, 512, 32
    $region13: #{tpu_custom_call.1} parent=1 // pred_fallthru
      _
    // Predicated region
    $region14: #{tpu_custom_call.1} parent=1 // pred_check
      _
    $region15: #{tpu_custom_call.1} parent=1 // pred_check_branch
      %53 = sbr.rel (0) target = $region17
    $region16: #{tpu_custom_call.1} parent=1 // pred_region
      %55 = vsyncadd [#allocation10], 0
      %s57 = sshll.u32 %s3, 4
      %s58 = int_to_ptr.hbm [resolvable:$true] %s57
      %s59 = sshll.u32 [#allocation9], 4
      %s60 = int_to_ptr.vmem [resolvable:$true] %s59
      %62 = dma.hbm_to_vmem [thread:$0]  %s58, 64, %s60, [#allocation10]
    $region17: #{tpu_custom_call.1} parent=1 // pred_fallthru
      _
    // Predicated region
    $region18: #{tpu_custom_call.1} parent=1 // pred_check
      _
    $region19: #{tpu_custom_call.1} parent=1 // pred_check_branch
      %64 = sbr.rel (0) target = $region21
    $region20: #{tpu_custom_call.1} parent=1 // pred_region
      %66 = vsyncadd [#allocation10], 0
      %s67 = sshll.u32 %s4, 4
      %s68 = int_to_ptr.hbm [resolvable:$true] %s67
      %s69 = sshll.u32 [#allocation11], 4
      %s70 = int_to_ptr.vmem [resolvable:$true] %s69
      %75 = dma.hbm_to_vmem [thread:$0]  %s68, 2048, %s70, [#allocation10], 128, 128, 8
    $region21: #{tpu_custom_call.1} parent=1 // pred_fallthru
      _
    // Predicated region
    $region22: #{tpu_custom_call.1} parent=1 // pred_check
      _
    $region23: #{tpu_custom_call.1} parent=1 // pred_check_branch
      %77 = sbr.rel (0) target = $region25
    $region24: #{tpu_custom_call.1} parent=1 // pred_region
      _
    $region25: #{tpu_custom_call.1} parent=1 // pred_fallthru
      _
    // Predicated region
    $region26: #{tpu_custom_call.1} parent=1 // pred_check
      _
    $region27: #{tpu_custom_call.1} parent=1 // pred_check_branch
      %79 = sbr.rel (0) target = $region29
    $region28: #{tpu_custom_call.1} parent=1 // pred_region
      %81 = dma.done [#allocation4], 1024
    $region29: #{tpu_custom_call.1} parent=1 // pred_fallthru
      _
    // Predicated region
    $region30: #{tpu_custom_call.1} parent=1 // pred_check
      _
    $region31: #{tpu_custom_call.1} parent=1 // pred_check_branch
      %83 = sbr.rel (0) target = $region33
    $region32: #{tpu_custom_call.1} parent=1 // pred_region
      %85 = dma.done [#allocation7], 512
    $region33: #{tpu_custom_call.1} parent=1 // pred_fallthru
      _
    // Predicated region
    $region34: #{tpu_custom_call.1} parent=1 // pred_check
      _
    $region35: #{tpu_custom_call.1} parent=1 // pred_check_branch
      %87 = sbr.rel (0) target = $region37
    $region36: #{tpu_custom_call.1} parent=1 // pred_region
      %89 = dma.done [#allocation7], 8192
    $region37: #{tpu_custom_call.1} parent=1 // pred_fallthru
      _
    // Predicated region
    $region38: #{tpu_custom_call.1} parent=1 // pred_check
      _
    $region39: #{tpu_custom_call.1} parent=1 // pred_check_branch
      %91 = sbr.rel (0) target = $region41
    $region40: #{tpu_custom_call.1} parent=1 // pred_region
      %93 = dma.done [#allocation10], 64
    $region41: #{tpu_custom_call.1} parent=1 // pred_fallthru
      _
    // Predicated region
    $region42: #{tpu_custom_call.1} parent=1 // pred_check
      _
    $region43: #{tpu_custom_call.1} parent=1 // pred_check_branch
      %95 = sbr.rel (0) target = $region45
    $region44: #{tpu_custom_call.1} parent=1 // pred_region
      %97 = dma.done [#allocation10], 2048
    $region45: #{tpu_custom_call.1} parent=1 // pred_fallthru
      _
    %v98 = vld [vmem:[#allocation3] sm:$0xff]
    %s99 = scalar_lea.vmem [#allocation3], 8
    %v100 = vld [vmem:[%s99] sm:$0xff]
    %s101 = scalar_lea.vmem [#allocation3], 16
    %v102 = vld [vmem:[%s101] sm:$0xff]
    %s103 = scalar_lea.vmem [#allocation3], 24
    %v104 = vld [vmem:[%s103] sm:$0xff]
    %s105 = scalar_lea.vmem [#allocation3], 32
    %v106 = vld [vmem:[%s105] sm:$0xff]
    %s107 = scalar_lea.vmem [#allocation3], 40
    %v108 = vld [vmem:[%s107] sm:$0xff]
    %s109 = scalar_lea.vmem [#allocation3], 48
    %v110 = vld [vmem:[%s109] sm:$0xff]
    %s111 = scalar_lea.vmem [#allocation3], 56
    %v112 = vld [vmem:[%s111] sm:$0xff]
    %v113 = vld [vmem:[#allocation6] sm:$0xff]
    %v114 = vld [vmem:[#allocation6 + $0x8] sm:$0xff]
    %v115 = vld [vmem:[#allocation6 + $0x10] sm:$0xff]
    %v116 = vld [vmem:[#allocation6 + $0x18] sm:$0xff]
    %v117 = vld [vmem:[#allocation9] sm:$0xf]
    %v119 = vperm.slane %v117, 0
    %v120 = vperm.slane %v117, 1
    %v121 = vperm.slane %v117, 2
    %v122 = vperm.slane %v117, 3
    %vm127 = vcmask 64512
    %v129 = vsel %vm127, %v98, 0
    %v132 = vsel %vm127, %v100, 0
    %v135 = vsel %vm127, %v102, 0
    %v138 = vsel %vm127, %v104, 0
    %v141 = vsel %vm127, %v106, 0
    %v144 = vsel %vm127, %v108, 0
    %v147 = vsel %vm127, %v110, 0
    %v150 = vsel %vm127, %v112, 0
    %152 = vmatpush.msra.mxu0 0.0
    %153 = vmatpush.msra.mxu0 0.0
    %154 = vmatpush.msra.mxu0 0.0
    %155 = vmatpush.msra.mxu0 0.0
    %156 = vmatpush.msra.mxu0 0.0
    %157 = vmatpush.msra.mxu0 0.0
    %158 = vmatpush.msra.mxu0 0.0
    %159 = vmatpush.msra.mxu0 0.0
    %160 = vmatpush.msra.mxu0 0.0
    %161 = vmatpush.msra.mxu0 0.0
    %162 = vmatpush.msra.mxu0 0.0
    %163 = vmatpush.msra.mxu0 0.0
    %164 = vmatpush.msra.mxu0 0.0
    %165 = vmatpush.msra.mxu0 0.0
    %166 = vmatpush.msra.mxu0 0.0
    %167 = vmatpush.msra.mxu0 %v113
    %168 = vmatmul.f32.gmra.mxu0 %v129
    %v169 = vpop.f32.mrf.mxu0
    %v170 = vadd.f32 %v119, %v169
    %171 = vmatmul.f32.gmra.mxu0 %v132
    %v172 = vpop.f32.mrf.mxu0
    %v173 = vadd.f32 %v119, %v172
    %174 = vmatmul.f32.gmra.mxu0 %v135
    %v175 = vpop.f32.mrf.mxu0
    %v176 = vadd.f32 %v119, %v175
    %177 = vmatmul.f32.gmra.mxu0 %v138
    %v178 = vpop.f32.mrf.mxu0
    %v179 = vadd.f32 %v119, %v178
    %180 = vmatmul.f32.gmra.mxu0 %v141
    %v181 = vpop.f32.mrf.mxu0
    %v182 = vadd.f32 %v119, %v181
    %183 = vmatmul.f32.gmra.mxu0 %v144
    %v184 = vpop.f32.mrf.mxu0
    %v185 = vadd.f32 %v119, %v184
    %186 = vmatmul.f32.gmra.mxu0 %v147
    %v187 = vpop.f32.mrf.mxu0
    %v188 = vadd.f32 %v119, %v187
    %189 = vmatmul.f32.gmra.mxu0 %v150
    %v190 = vpop.f32.mrf.mxu0
    %v191 = vadd.f32 %v119, %v190
    %192 = vdwg.mxu0
    %193 = vmatpush.msra.mxu0 0.0
    %194 = vmatpush.msra.mxu0 0.0
    %195 = vmatpush.msra.mxu0 0.0
    %196 = vmatpush.msra.mxu0 0.0
    %197 = vmatpush.msra.mxu0 0.0
    %198 = vmatpush.msra.mxu0 0.0
    %199 = vmatpush.msra.mxu0 0.0
    %200 = vmatpush.msra.mxu0 0.0
    %201 = vmatpush.msra.mxu0 0.0
    %202 = vmatpush.msra.mxu0 0.0
    %203 = vmatpush.msra.mxu0 0.0
    %204 = vmatpush.msra.mxu0 0.0
    %205 = vmatpush.msra.mxu0 0.0
    %206 = vmatpush.msra.mxu0 0.0
    %207 = vmatpush.msra.mxu0 0.0
    %208 = vmatpush.msra.mxu0 %v114
    %209 = vmatmul.f32.gmra.mxu0 %v129
    %v210 = vpop.f32.mrf.mxu0
    %v211 = vadd.f32 %v120, %v210
    %212 = vmatmul.f32.gmra.mxu0 %v132
    %v213 = vpop.f32.mrf.mxu0
    %v214 = vadd.f32 %v120, %v213
    %215 = vmatmul.f32.gmra.mxu0 %v135
    %v216 = vpop.f32.mrf.mxu0
    %v217 = vadd.f32 %v120, %v216
    %218 = vmatmul.f32.gmra.mxu0 %v138
    %v219 = vpop.f32.mrf.mxu0
    %v220 = vadd.f32 %v120, %v219
    %221 = vmatmul.f32.gmra.mxu0 %v141
    %v222 = vpop.f32.mrf.mxu0
    %v223 = vadd.f32 %v120, %v222
    %224 = vmatmul.f32.gmra.mxu0 %v144
    %v225 = vpop.f32.mrf.mxu0
    %v226 = vadd.f32 %v120, %v225
    %227 = vmatmul.f32.gmra.mxu0 %v147
    %v228 = vpop.f32.mrf.mxu0
    %v229 = vadd.f32 %v120, %v228
    %230 = vmatmul.f32.gmra.mxu0 %v150
    %v231 = vpop.f32.mrf.mxu0
    %v232 = vadd.f32 %v120, %v231
    %233 = vdwg.mxu0
    %234 = vmatpush.msra.mxu0 0.0
    %235 = vmatpush.msra.mxu0 0.0
    %236 = vmatpush.msra.mxu0 0.0
    %237 = vmatpush.msra.mxu0 0.0
    %238 = vmatpush.msra.mxu0 0.0
    %239 = vmatpush.msra.mxu0 0.0
    %240 = vmatpush.msra.mxu0 0.0
    %241 = vmatpush.msra.mxu0 0.0
    %242 = vmatpush.msra.mxu0 0.0
    %243 = vmatpush.msra.mxu0 0.0
    %244 = vmatpush.msra.mxu0 0.0
    %245 = vmatpush.msra.mxu0 0.0
    %246 = vmatpush.msra.mxu0 0.0
    %247 = vmatpush.msra.mxu0 0.0
    %248 = vmatpush.msra.mxu0 0.0
    %249 = vmatpush.msra.mxu0 %v115
    %250 = vmatmul.f32.gmra.mxu0 %v129
    %v251 = vpop.f32.mrf.mxu0
    %v252 = vadd.f32 %v121, %v251
    %253 = vmatmul.f32.gmra.mxu0 %v132
    %v254 = vpop.f32.mrf.mxu0
    %v255 = vadd.f32 %v121, %v254
    %256 = vmatmul.f32.gmra.mxu0 %v135
    %v257 = vpop.f32.mrf.mxu0
    %v258 = vadd.f32 %v121, %v257
    %259 = vmatmul.f32.gmra.mxu0 %v138
    %v260 = vpop.f32.mrf.mxu0
    %v261 = vadd.f32 %v121, %v260
    %262 = vmatmul.f32.gmra.mxu0 %v141
    %v263 = vpop.f32.mrf.mxu0
    %v264 = vadd.f32 %v121, %v263
    %265 = vmatmul.f32.gmra.mxu0 %v144
    %v266 = vpop.f32.mrf.mxu0
    %v267 = vadd.f32 %v121, %v266
    %268 = vmatmul.f32.gmra.mxu0 %v147
    %v269 = vpop.f32.mrf.mxu0
    %v270 = vadd.f32 %v121, %v269
    %271 = vmatmul.f32.gmra.mxu0 %v150
    %v272 = vpop.f32.mrf.mxu0
    %v273 = vadd.f32 %v121, %v272
    %274 = vdwg.mxu0
    %275 = vmatpush.msra.mxu0 0.0
    %276 = vmatpush.msra.mxu0 0.0
    %277 = vmatpush.msra.mxu0 0.0
    %278 = vmatpush.msra.mxu0 0.0
    %279 = vmatpush.msra.mxu0 0.0
    %280 = vmatpush.msra.mxu0 0.0
    %281 = vmatpush.msra.mxu0 0.0
    %282 = vmatpush.msra.mxu0 0.0
    %283 = vmatpush.msra.mxu0 0.0
    %284 = vmatpush.msra.mxu0 0.0
    %285 = vmatpush.msra.mxu0 0.0
    %286 = vmatpush.msra.mxu0 0.0
    %287 = vmatpush.msra.mxu0 0.0
    %288 = vmatpush.msra.mxu0 0.0
    %289 = vmatpush.msra.mxu0 0.0
    %290 = vmatpush.msra.mxu0 %v116
    %291 = vmatmul.f32.gmra.mxu0 %v129
    %v292 = vpop.f32.mrf.mxu0
    %v293 = vadd.f32 %v122, %v292
    %294 = vmatmul.f32.gmra.mxu0 %v132
    %v295 = vpop.f32.mrf.mxu0
    %v296 = vadd.f32 %v122, %v295
    %297 = vmatmul.f32.gmra.mxu0 %v135
    %v298 = vpop.f32.mrf.mxu0
    %v299 = vadd.f32 %v122, %v298
    %300 = vmatmul.f32.gmra.mxu0 %v138
    %v301 = vpop.f32.mrf.mxu0
    %v302 = vadd.f32 %v122, %v301
    %303 = vmatmul.f32.gmra.mxu0 %v141
    %v304 = vpop.f32.mrf.mxu0
    %v305 = vadd.f32 %v122, %v304
    %306 = vmatmul.f32.gmra.mxu0 %v144
    %v307 = vpop.f32.mrf.mxu0
    %v308 = vadd.f32 %v122, %v307
    %309 = vmatmul.f32.gmra.mxu0 %v147
    %v310 = vpop.f32.mrf.mxu0
    %v311 = vadd.f32 %v122, %v310
    %312 = vmatmul.f32.gmra.mxu0 %v150
    %v313 = vpop.f32.mrf.mxu0
    %v314 = vadd.f32 %v122, %v313
    %315 = vdwg.mxu0
    %316 = vst [vmem:[#allocation2] sm:$0xff] %v170
    %317 = vst [vmem:[#allocation2 + $0x8] sm:$0xff] %v211
    %318 = vst [vmem:[#allocation2 + $0x10] sm:$0xff] %v252
    %319 = vst [vmem:[#allocation2 + $0x18] sm:$0xff] %v293
    %320 = vst [vmem:[#allocation2 + $0x20] sm:$0xff] %v173
    %321 = vst [vmem:[#allocation2 + $0x28] sm:$0xff] %v214
    %322 = vst [vmem:[#allocation2 + $0x30] sm:$0xff] %v255
    %323 = vst [vmem:[#allocation2 + $0x38] sm:$0xff] %v296
    %324 = vst [vmem:[#allocation2 + $0x40] sm:$0xff] %v176
    %325 = vst [vmem:[#allocation2 + $0x48] sm:$0xff] %v217
    %326 = vst [vmem:[#allocation2 + $0x50] sm:$0xff] %v258
    %327 = vst [vmem:[#allocation2 + $0x58] sm:$0xff] %v299
    %328 = vst [vmem:[#allocation2 + $0x60] sm:$0xff] %v179
    %329 = vst [vmem:[#allocation2 + $0x68] sm:$0xff] %v220
    %330 = vst [vmem:[#allocation2 + $0x70] sm:$0xff] %v261
    %331 = vst [vmem:[#allocation2 + $0x78] sm:$0xff] %v302
    %332 = vst [vmem:[#allocation2 + $0x80] sm:$0xff] %v182
    %333 = vst [vmem:[#allocation2 + $0x88] sm:$0xff] %v223
    %334 = vst [vmem:[#allocation2 + $0x90] sm:$0xff] %v264
    %335 = vst [vmem:[#allocation2 + $0x98] sm:$0xff] %v305
    %336 = vst [vmem:[#allocation2 + $0xa0] sm:$0xff] %v185
    %337 = vst [vmem:[#allocation2 + $0xa8] sm:$0xff] %v226
    %338 = vst [vmem:[#allocation2 + $0xb0] sm:$0xff] %v267
    %339 = vst [vmem:[#allocation2 + $0xb8] sm:$0xff] %v308
    %340 = vst [vmem:[#allocation2 + $0xc0] sm:$0xff] %v188
    %341 = vst [vmem:[#allocation2 + $0xc8] sm:$0xff] %v229
    %342 = vst [vmem:[#allocation2 + $0xd0] sm:$0xff] %v270
    %343 = vst [vmem:[#allocation2 + $0xd8] sm:$0xff] %v311
    %344 = vst [vmem:[#allocation2 + $0xe0] sm:$0xff] %v191
    %345 = vst [vmem:[#allocation2 + $0xe8] sm:$0xff] %v232
    %346 = vst [vmem:[#allocation2 + $0xf0] sm:$0xff] %v273
    %347 = vst [vmem:[#allocation2 + $0xf8] sm:$0xff] %v314
    %v348 = vld [vmem:[#allocation8] sm:$0xff]
    %v349 = vld [vmem:[#allocation8 + $0x8] sm:$0xff]
    %v350 = vld [vmem:[#allocation8 + $0x10] sm:$0xff]
    %v351 = vld [vmem:[#allocation8 + $0x18] sm:$0xff]
    %v352 = vld [vmem:[#allocation8 + $0x20] sm:$0xff]
    %v353 = vld [vmem:[#allocation8 + $0x28] sm:$0xff]
    %v354 = vld [vmem:[#allocation8 + $0x30] sm:$0xff]
    %v355 = vld [vmem:[#allocation8 + $0x38] sm:$0xff]
    %v356 = vld [vmem:[#allocation8 + $0x40] sm:$0xff]
    %v357 = vld [vmem:[#allocation8 + $0x48] sm:$0xff]
    %v358 = vld [vmem:[#allocation8 + $0x50] sm:$0xff]
    %v359 = vld [vmem:[#allocation8 + $0x58] sm:$0xff]
    %v360 = vld [vmem:[#allocation8 + $0x60] sm:$0xff]
    %v361 = vld [vmem:[#allocation8 + $0x68] sm:$0xff]
    %v362 = vld [vmem:[#allocation8 + $0x70] sm:$0xff]
    %v363 = vld [vmem:[#allocation8 + $0x78] sm:$0xff]
    %v364 = vld [vmem:[#allocation8 + $0x80] sm:$0xff]
    %v365 = vld [vmem:[#allocation8 + $0x88] sm:$0xff]
    %v366 = vld [vmem:[#allocation8 + $0x90] sm:$0xff]
    %v367 = vld [vmem:[#allocation8 + $0x98] sm:$0xff]
    %v368 = vld [vmem:[#allocation8 + $0xa0] sm:$0xff]
    %v369 = vld [vmem:[#allocation8 + $0xa8] sm:$0xff]
    %v370 = vld [vmem:[#allocation8 + $0xb0] sm:$0xff]
    %v371 = vld [vmem:[#allocation8 + $0xb8] sm:$0xff]
    %v372 = vld [vmem:[#allocation8 + $0xc0] sm:$0xff]
    %v373 = vld [vmem:[#allocation8 + $0xc8] sm:$0xff]
    %v374 = vld [vmem:[#allocation8 + $0xd0] sm:$0xff]
    %v375 = vld [vmem:[#allocation8 + $0xd8] sm:$0xff]
    %v376 = vld [vmem:[#allocation8 + $0xe0] sm:$0xff]
    %v377 = vld [vmem:[#allocation8 + $0xe8] sm:$0xff]
    %v378 = vld [vmem:[#allocation8 + $0xf0] sm:$0xff]
    %v379 = vld [vmem:[#allocation8 + $0xf8] sm:$0xff]
    %v380 = vld [vmem:[#allocation8 + $0x100] sm:$0xff]
    %v381 = vld [vmem:[#allocation8 + $0x108] sm:$0xff]
    %v382 = vld [vmem:[#allocation8 + $0x110] sm:$0xff]
    %v383 = vld [vmem:[#allocation8 + $0x118] sm:$0xff]
    %v384 = vld [vmem:[#allocation8 + $0x120] sm:$0xff]
    %v385 = vld [vmem:[#allocation8 + $0x128] sm:$0xff]
    %v386 = vld [vmem:[#allocation8 + $0x130] sm:$0xff]
    %v387 = vld [vmem:[#allocation8 + $0x138] sm:$0xff]
    %v388 = vld [vmem:[#allocation8 + $0x140] sm:$0xff]
    %v389 = vld [vmem:[#allocation8 + $0x148] sm:$0xff]
    %v390 = vld [vmem:[#allocation8 + $0x150] sm:$0xff]
    %v391 = vld [vmem:[#allocation8 + $0x158] sm:$0xff]
    %v392 = vld [vmem:[#allocation8 + $0x160] sm:$0xff]
    %v393 = vld [vmem:[#allocation8 + $0x168] sm:$0xff]
    %v394 = vld [vmem:[#allocation8 + $0x170] sm:$0xff]
    %v395 = vld [vmem:[#allocation8 + $0x178] sm:$0xff]
    %v396 = vld [vmem:[#allocation8 + $0x180] sm:$0xff]
    %v397 = vld [vmem:[#allocation8 + $0x188] sm:$0xff]
    %v398 = vld [vmem:[#allocation8 + $0x190] sm:$0xff]
    %v399 = vld [vmem:[#allocation8 + $0x198] sm:$0xff]
    %v400 = vld [vmem:[#allocation8 + $0x1a0] sm:$0xff]
    %v401 = vld [vmem:[#allocation8 + $0x1a8] sm:$0xff]
    %v402 = vld [vmem:[#allocation8 + $0x1b0] sm:$0xff]
    %v403 = vld [vmem:[#allocation8 + $0x1b8] sm:$0xff]
    %v404 = vld [vmem:[#allocation8 + $0x1c0] sm:$0xff]
    %v405 = vld [vmem:[#allocation8 + $0x1c8] sm:$0xff]
    %v406 = vld [vmem:[#allocation8 + $0x1d0] sm:$0xff]
    %v407 = vld [vmem:[#allocation8 + $0x1d8] sm:$0xff]
    %v408 = vld [vmem:[#allocation8 + $0x1e0] sm:$0xff]
    %v409 = vld [vmem:[#allocation8 + $0x1e8] sm:$0xff]
    %v410 = vld [vmem:[#allocation8 + $0x1f0] sm:$0xff]
    %v411 = vld [vmem:[#allocation8 + $0x1f8] sm:$0xff]
    %s412 = smul.u32 0, 4
    %s413 = smul.addr %s412, 8
    %s414 = scalar_lea.vmem [#allocation2], %s413
    %v415 = vld [vmem:[%s414] sm:$0xff]
    %v416 = vld [vmem:[%s414 + $0x8] sm:$0xff]
    %v417 = vld [vmem:[%s414 + $0x10] sm:$0xff]
    %v418 = vld [vmem:[%s414 + $0x18] sm:$0xff]
    %419 = vmatpush.msra.mxu0 %v408
    %420 = vmatpush.msra.mxu0 %v404
    %421 = vmatpush.msra.mxu0 %v400
    %422 = vmatpush.msra.mxu0 %v396
    %423 = vmatpush.msra.mxu0 %v392
    %424 = vmatpush.msra.mxu0 %v388
    %425 = vmatpush.msra.mxu0 %v384
    %426 = vmatpush.msra.mxu0 %v380
    %427 = vmatpush.msra.mxu0 %v376
    %428 = vmatpush.msra.mxu0 %v372
    %429 = vmatpush.msra.mxu0 %v368
    %430 = vmatpush.msra.mxu0 %v364
    %431 = vmatpush.msra.mxu0 %v360
    %432 = vmatpush.msra.mxu0 %v356
    %433 = vmatpush.msra.mxu0 %v352
    %434 = vmatpush.msra.mxu0 %v348
    %435 = vmatmul.f32.gmra.mxu0 0.0
    %v436 = vpop.f32.mrf.mxu0
    %v437 = vadd.f32 0.0, %v436
    %438 = vdwg.mxu0
    %439 = vmatpush.msra.mxu0 %v409
    %440 = vmatpush.msra.mxu0 %v405
    %441 = vmatpush.msra.mxu0 %v401
    %442 = vmatpush.msra.mxu0 %v397
    %443 = vmatpush.msra.mxu0 %v393
    %444 = vmatpush.msra.mxu0 %v389
    %445 = vmatpush.msra.mxu0 %v385
    %446 = vmatpush.msra.mxu0 %v381
    %447 = vmatpush.msra.mxu0 %v377
    %448 = vmatpush.msra.mxu0 %v373
    %449 = vmatpush.msra.mxu0 %v369
    %450 = vmatpush.msra.mxu0 %v365
    %451 = vmatpush.msra.mxu0 %v361
    %452 = vmatpush.msra.mxu0 %v357
    %453 = vmatpush.msra.mxu0 %v353
    %454 = vmatpush.msra.mxu0 %v349
    %455 = vmatmul.f32.gmra.mxu0 0.0
    %v456 = vpop.f32.mrf.mxu0
    %v457 = vadd.f32 0.0, %v456
    %458 = vdwg.mxu0
    %459 = vmatpush.msra.mxu0 %v410
    %460 = vmatpush.msra.mxu0 %v406
    %461 = vmatpush.msra.mxu0 %v402
    %462 = vmatpush.msra.mxu0 %v398
    %463 = vmatpush.msra.mxu0 %v394
    %464 = vmatpush.msra.mxu0 %v390
    %465 = vmatpush.msra.mxu0 %v386
    %466 = vmatpush.msra.mxu0 %v382
    %467 = vmatpush.msra.mxu0 %v378
    %468 = vmatpush.msra.mxu0 %v374
    %469 = vmatpush.msra.mxu0 %v370
    %470 = vmatpush.msra.mxu0 %v366
    %471 = vmatpush.msra.mxu0 %v362
    %472 = vmatpush.msra.mxu0 %v358
    %473 = vmatpush.msra.mxu0 %v354
    %474 = vmatpush.msra.mxu0 %v350
    %475 = vmatmul.f32.gmra.mxu0 0.0
    %v476 = vpop.f32.mrf.mxu0
    %v477 = vadd.f32 0.0, %v476
    %478 = vdwg.mxu0
    %479 = vmatpush.msra.mxu0 %v411
    %480 = vmatpush.msra.mxu0 %v407
    %481 = vmatpush.msra.mxu0 %v403
    %482 = vmatpush.msra.mxu0 %v399
    %483 = vmatpush.msra.mxu0 %v395
    %484 = vmatpush.msra.mxu0 %v391
    %485 = vmatpush.msra.mxu0 %v387
    %486 = vmatpush.msra.mxu0 %v383
    %487 = vmatpush.msra.mxu0 %v379
    %488 = vmatpush.msra.mxu0 %v375
    %489 = vmatpush.msra.mxu0 %v371
    %490 = vmatpush.msra.mxu0 %v367
    %491 = vmatpush.msra.mxu0 %v363
    %492 = vmatpush.msra.mxu0 %v359
    %493 = vmatpush.msra.mxu0 %v355
    %494 = vmatpush.msra.mxu0 %v351
    %495 = vmatmul.f32.gmra.mxu0 0.0
    %v496 = vpop.f32.mrf.mxu0
    %v497 = vadd.f32 0.0, %v496
    %498 = vdwg.mxu0
    %v499 = vadd.f32 %v415, %v437
    %v500 = vadd.f32 %v416, %v457
    %v501 = vadd.f32 %v417, %v477
    %v502 = vadd.f32 %v418, %v497
    %v503 = vmul.f32 %v499, 0.5
    %v504 = vtanh.pop %v503
    %v505 = vadd.f32 %v504, 1.0
    %v506 = vmul.f32 %v505, 0.5
    %v507 = vmul.f32 %v500, 0.5
    %v508 = vtanh.pop %v507
    %v509 = vadd.f32 %v508, 1.0
    %v510 = vmul.f32 %v509, 0.5
    %v511 = vtanh.pop %v501
    %v512 = vmul.f32 %v502, 0.5
    %v513 = vtanh.pop %v512
    %v514 = vadd.f32 %v513, 1.0
    %v515 = vmul.f32 %v514, 0.5
    %v516 = vmul.f32 %v510, 0.0
    %v517 = vmul.f32 %v506, %v511
    %v518 = vadd.f32 %v516, %v517
    %v519 = vtanh.pop %v518
    %v520 = vmul.f32 %v515, %v519
    %s521 = smul.u32 1, 4
    %s522 = smul.addr %s521, 8
    %s523 = scalar_lea.vmem [#allocation2], %s522
    %v524 = vld [vmem:[%s523] sm:$0xff]
    %v525 = vld [vmem:[%s523 + $0x8] sm:$0xff]
    %v526 = vld [vmem:[%s523 + $0x10] sm:$0xff]
    %v527 = vld [vmem:[%s523 + $0x18] sm:$0xff]
    %528 = vmatpush.msra.mxu0 %v408
    %529 = vmatpush.msra.mxu0 %v404
    %530 = vmatpush.msra.mxu0 %v400
    %531 = vmatpush.msra.mxu0 %v396
    %532 = vmatpush.msra.mxu0 %v392
    %533 = vmatpush.msra.mxu0 %v388
    %534 = vmatpush.msra.mxu0 %v384
    %535 = vmatpush.msra.mxu0 %v380
    %536 = vmatpush.msra.mxu0 %v376
    %537 = vmatpush.msra.mxu0 %v372
    %538 = vmatpush.msra.mxu0 %v368
    %539 = vmatpush.msra.mxu0 %v364
    %540 = vmatpush.msra.mxu0 %v360
    %541 = vmatpush.msra.mxu0 %v356
    %542 = vmatpush.msra.mxu0 %v352
    %543 = vmatpush.msra.mxu0 %v348
    %544 = vmatmul.f32.gmra.mxu0 %v520
    %v545 = vpop.f32.mrf.mxu0
    %v546 = vadd.f32 0.0, %v545
    %547 = vdwg.mxu0
    %548 = vmatpush.msra.mxu0 %v409
    %549 = vmatpush.msra.mxu0 %v405
    %550 = vmatpush.msra.mxu0 %v401
    %551 = vmatpush.msra.mxu0 %v397
    %552 = vmatpush.msra.mxu0 %v393
    %553 = vmatpush.msra.mxu0 %v389
    %554 = vmatpush.msra.mxu0 %v385
    %555 = vmatpush.msra.mxu0 %v381
    %556 = vmatpush.msra.mxu0 %v377
    %557 = vmatpush.msra.mxu0 %v373
    %558 = vmatpush.msra.mxu0 %v369
    %559 = vmatpush.msra.mxu0 %v365
    %560 = vmatpush.msra.mxu0 %v361
    %561 = vmatpush.msra.mxu0 %v357
    %562 = vmatpush.msra.mxu0 %v353
    %563 = vmatpush.msra.mxu0 %v349
    %564 = vmatmul.f32.gmra.mxu0 %v520
    %v565 = vpop.f32.mrf.mxu0
    %v566 = vadd.f32 0.0, %v565
    %567 = vdwg.mxu0
    %568 = vmatpush.msra.mxu0 %v410
    %569 = vmatpush.msra.mxu0 %v406
    %570 = vmatpush.msra.mxu0 %v402
    %571 = vmatpush.msra.mxu0 %v398
    %572 = vmatpush.msra.mxu0 %v394
    %573 = vmatpush.msra.mxu0 %v390
    %574 = vmatpush.msra.mxu0 %v386
    %575 = vmatpush.msra.mxu0 %v382
    %576 = vmatpush.msra.mxu0 %v378
    %577 = vmatpush.msra.mxu0 %v374
    %578 = vmatpush.msra.mxu0 %v370
    %579 = vmatpush.msra.mxu0 %v366
    %580 = vmatpush.msra.mxu0 %v362
    %581 = vmatpush.msra.mxu0 %v358
    %582 = vmatpush.msra.mxu0 %v354
    %583 = vmatpush.msra.mxu0 %v350
    %584 = vmatmul.f32.gmra.mxu0 %v520
    %v585 = vpop.f32.mrf.mxu0
    %v586 = vadd.f32 0.0, %v585
    %587 = vdwg.mxu0
    %588 = vmatpush.msra.mxu0 %v411
    %589 = vmatpush.msra.mxu0 %v407
    %590 = vmatpush.msra.mxu0 %v403
    %591 = vmatpush.msra.mxu0 %v399
    %592 = vmatpush.msra.mxu0 %v395
    %593 = vmatpush.msra.mxu0 %v391
    %594 = vmatpush.msra.mxu0 %v387
    %595 = vmatpush.msra.mxu0 %v383
    %596 = vmatpush.msra.mxu0 %v379
    %597 = vmatpush.msra.mxu0 %v375
    %598 = vmatpush.msra.mxu0 %v371
    %599 = vmatpush.msra.mxu0 %v367
    %600 = vmatpush.msra.mxu0 %v363
    %601 = vmatpush.msra.mxu0 %v359
    %602 = vmatpush.msra.mxu0 %v355
    %603 = vmatpush.msra.mxu0 %v351
    %604 = vmatmul.f32.gmra.mxu0 %v520
    %v605 = vpop.f32.mrf.mxu0
    %v606 = vadd.f32 0.0, %v605
    %607 = vdwg.mxu0
    %v608 = vadd.f32 %v524, %v546
    %v609 = vadd.f32 %v525, %v566
    %v610 = vadd.f32 %v526, %v586
    %v611 = vadd.f32 %v527, %v606
    %v612 = vmul.f32 %v608, 0.5
    %v613 = vtanh.pop %v612
    %v614 = vadd.f32 %v613, 1.0
    %v615 = vmul.f32 %v614, 0.5
    %v616 = vmul.f32 %v609, 0.5
    %v617 = vtanh.pop %v616
    %v618 = vadd.f32 %v617, 1.0
    %v619 = vmul.f32 %v618, 0.5
    %v620 = vtanh.pop %v610
    %v621 = vmul.f32 %v611, 0.5
    %v622 = vtanh.pop %v621
    %v623 = vadd.f32 %v622, 1.0
    %v624 = vmul.f32 %v623, 0.5
    %v625 = vmul.f32 %v619, %v518
    %v626 = vmul.f32 %v615, %v620
    %v627 = vadd.f32 %v625, %v626
    %v628 = vtanh.pop %v627
    %v629 = vmul.f32 %v624, %v628
    %s630 = smul.u32 2, 4
    %s631 = smul.addr %s630, 8
    %s632 = scalar_lea.vmem [#allocation2], %s631
    %v633 = vld [vmem:[%s632] sm:$0xff]
    %v634 = vld [vmem:[%s632 + $0x8] sm:$0xff]
    %v635 = vld [vmem:[%s632 + $0x10] sm:$0xff]
    %v636 = vld [vmem:[%s632 + $0x18] sm:$0xff]
    %637 = vmatpush.msra.mxu0 %v408
    %638 = vmatpush.msra.mxu0 %v404
    %639 = vmatpush.msra.mxu0 %v400
    %640 = vmatpush.msra.mxu0 %v396
    %641 = vmatpush.msra.mxu0 %v392
    %642 = vmatpush.msra.mxu0 %v388
    %643 = vmatpush.msra.mxu0 %v384
    %644 = vmatpush.msra.mxu0 %v380
    %645 = vmatpush.msra.mxu0 %v376
    %646 = vmatpush.msra.mxu0 %v372
    %647 = vmatpush.msra.mxu0 %v368
    %648 = vmatpush.msra.mxu0 %v364
    %649 = vmatpush.msra.mxu0 %v360
    %650 = vmatpush.msra.mxu0 %v356
    %651 = vmatpush.msra.mxu0 %v352
    %652 = vmatpush.msra.mxu0 %v348
    %653 = vmatmul.f32.gmra.mxu0 %v629
    %v654 = vpop.f32.mrf.mxu0
    %v655 = vadd.f32 0.0, %v654
    %656 = vdwg.mxu0
    %657 = vmatpush.msra.mxu0 %v409
    %658 = vmatpush.msra.mxu0 %v405
    %659 = vmatpush.msra.mxu0 %v401
    %660 = vmatpush.msra.mxu0 %v397
    %661 = vmatpush.msra.mxu0 %v393
    %662 = vmatpush.msra.mxu0 %v389
    %663 = vmatpush.msra.mxu0 %v385
    %664 = vmatpush.msra.mxu0 %v381
    %665 = vmatpush.msra.mxu0 %v377
    %666 = vmatpush.msra.mxu0 %v373
    %667 = vmatpush.msra.mxu0 %v369
    %668 = vmatpush.msra.mxu0 %v365
    %669 = vmatpush.msra.mxu0 %v361
    %670 = vmatpush.msra.mxu0 %v357
    %671 = vmatpush.msra.mxu0 %v353
    %672 = vmatpush.msra.mxu0 %v349
    %673 = vmatmul.f32.gmra.mxu0 %v629
    %v674 = vpop.f32.mrf.mxu0
    %v675 = vadd.f32 0.0, %v674
    %676 = vdwg.mxu0
    %677 = vmatpush.msra.mxu0 %v410
    %678 = vmatpush.msra.mxu0 %v406
    %679 = vmatpush.msra.mxu0 %v402
    %680 = vmatpush.msra.mxu0 %v398
    %681 = vmatpush.msra.mxu0 %v394
    %682 = vmatpush.msra.mxu0 %v390
    %683 = vmatpush.msra.mxu0 %v386
    %684 = vmatpush.msra.mxu0 %v382
    %685 = vmatpush.msra.mxu0 %v378
    %686 = vmatpush.msra.mxu0 %v374
    %687 = vmatpush.msra.mxu0 %v370
    %688 = vmatpush.msra.mxu0 %v366
    %689 = vmatpush.msra.mxu0 %v362
    %690 = vmatpush.msra.mxu0 %v358
    %691 = vmatpush.msra.mxu0 %v354
    %692 = vmatpush.msra.mxu0 %v350
    %693 = vmatmul.f32.gmra.mxu0 %v629
    %v694 = vpop.f32.mrf.mxu0
    %v695 = vadd.f32 0.0, %v694
    %696 = vdwg.mxu0
    %697 = vmatpush.msra.mxu0 %v411
    %698 = vmatpush.msra.mxu0 %v407
    %699 = vmatpush.msra.mxu0 %v403
    %700 = vmatpush.msra.mxu0 %v399
    %701 = vmatpush.msra.mxu0 %v395
    %702 = vmatpush.msra.mxu0 %v391
    %703 = vmatpush.msra.mxu0 %v387
    %704 = vmatpush.msra.mxu0 %v383
    %705 = vmatpush.msra.mxu0 %v379
    %706 = vmatpush.msra.mxu0 %v375
    %707 = vmatpush.msra.mxu0 %v371
    %708 = vmatpush.msra.mxu0 %v367
    %709 = vmatpush.msra.mxu0 %v363
    %710 = vmatpush.msra.mxu0 %v359
    %711 = vmatpush.msra.mxu0 %v355
    %712 = vmatpush.msra.mxu0 %v351
    %713 = vmatmul.f32.gmra.mxu0 %v629
    %v714 = vpop.f32.mrf.mxu0
    %v715 = vadd.f32 0.0, %v714
    %716 = vdwg.mxu0
    %v717 = vadd.f32 %v633, %v655
    %v718 = vadd.f32 %v634, %v675
    %v719 = vadd.f32 %v635, %v695
    %v720 = vadd.f32 %v636, %v715
    %v721 = vmul.f32 %v717, 0.5
    %v722 = vtanh.pop %v721
    %v723 = vadd.f32 %v722, 1.0
    %v724 = vmul.f32 %v723, 0.5
    %v725 = vmul.f32 %v718, 0.5
    %v726 = vtanh.pop %v725
    %v727 = vadd.f32 %v726, 1.0
    %v728 = vmul.f32 %v727, 0.5
    %v729 = vtanh.pop %v719
    %v730 = vmul.f32 %v720, 0.5
    %v731 = vtanh.pop %v730
    %v732 = vadd.f32 %v731, 1.0
    %v733 = vmul.f32 %v732, 0.5
    %v734 = vmul.f32 %v728, %v627
    %v735 = vmul.f32 %v724, %v729
    %v736 = vadd.f32 %v734, %v735
    %v737 = vtanh.pop %v736
    %v738 = vmul.f32 %v733, %v737
    %s739 = smul.u32 3, 4
    %s740 = smul.addr %s739, 8
    %s741 = scalar_lea.vmem [#allocation2], %s740
    %v742 = vld [vmem:[%s741] sm:$0xff]
    %v743 = vld [vmem:[%s741 + $0x8] sm:$0xff]
    %v744 = vld [vmem:[%s741 + $0x10] sm:$0xff]
    %v745 = vld [vmem:[%s741 + $0x18] sm:$0xff]
    %746 = vmatpush.msra.mxu0 %v408
    %747 = vmatpush.msra.mxu0 %v404
    %748 = vmatpush.msra.mxu0 %v400
    %749 = vmatpush.msra.mxu0 %v396
    %750 = vmatpush.msra.mxu0 %v392
    %751 = vmatpush.msra.mxu0 %v388
    %752 = vmatpush.msra.mxu0 %v384
    %753 = vmatpush.msra.mxu0 %v380
    %754 = vmatpush.msra.mxu0 %v376
    %755 = vmatpush.msra.mxu0 %v372
    %756 = vmatpush.msra.mxu0 %v368
    %757 = vmatpush.msra.mxu0 %v364
    %758 = vmatpush.msra.mxu0 %v360
    %759 = vmatpush.msra.mxu0 %v356
    %760 = vmatpush.msra.mxu0 %v352
    %761 = vmatpush.msra.mxu0 %v348
    %762 = vmatmul.f32.gmra.mxu0 %v738
    %v763 = vpop.f32.mrf.mxu0
    %v764 = vadd.f32 0.0, %v763
    %765 = vdwg.mxu0
    %766 = vmatpush.msra.mxu0 %v409
    %767 = vmatpush.msra.mxu0 %v405
    %768 = vmatpush.msra.mxu0 %v401
    %769 = vmatpush.msra.mxu0 %v397
    %770 = vmatpush.msra.mxu0 %v393
    %771 = vmatpush.msra.mxu0 %v389
    %772 = vmatpush.msra.mxu0 %v385
    %773 = vmatpush.msra.mxu0 %v381
    %774 = vmatpush.msra.mxu0 %v377
    %775 = vmatpush.msra.mxu0 %v373
    %776 = vmatpush.msra.mxu0 %v369
    %777 = vmatpush.msra.mxu0 %v365
    %778 = vmatpush.msra.mxu0 %v361
    %779 = vmatpush.msra.mxu0 %v357
    %780 = vmatpush.msra.mxu0 %v353
    %781 = vmatpush.msra.mxu0 %v349
    %782 = vmatmul.f32.gmra.mxu0 %v738
    %v783 = vpop.f32.mrf.mxu0
    %v784 = vadd.f32 0.0, %v783
    %785 = vdwg.mxu0
    %786 = vmatpush.msra.mxu0 %v410
    %787 = vmatpush.msra.mxu0 %v406
    %788 = vmatpush.msra.mxu0 %v402
    %789 = vmatpush.msra.mxu0 %v398
    %790 = vmatpush.msra.mxu0 %v394
    %791 = vmatpush.msra.mxu0 %v390
    %792 = vmatpush.msra.mxu0 %v386
    %793 = vmatpush.msra.mxu0 %v382
    %794 = vmatpush.msra.mxu0 %v378
    %795 = vmatpush.msra.mxu0 %v374
    %796 = vmatpush.msra.mxu0 %v370
    %797 = vmatpush.msra.mxu0 %v366
    %798 = vmatpush.msra.mxu0 %v362
    %799 = vmatpush.msra.mxu0 %v358
    %800 = vmatpush.msra.mxu0 %v354
    %801 = vmatpush.msra.mxu0 %v350
    %802 = vmatmul.f32.gmra.mxu0 %v738
    %v803 = vpop.f32.mrf.mxu0
    %v804 = vadd.f32 0.0, %v803
    %805 = vdwg.mxu0
    %806 = vmatpush.msra.mxu0 %v411
    %807 = vmatpush.msra.mxu0 %v407
    %808 = vmatpush.msra.mxu0 %v403
    %809 = vmatpush.msra.mxu0 %v399
    %810 = vmatpush.msra.mxu0 %v395
    %811 = vmatpush.msra.mxu0 %v391
    %812 = vmatpush.msra.mxu0 %v387
    %813 = vmatpush.msra.mxu0 %v383
    %814 = vmatpush.msra.mxu0 %v379
    %815 = vmatpush.msra.mxu0 %v375
    %816 = vmatpush.msra.mxu0 %v371
    %817 = vmatpush.msra.mxu0 %v367
    %818 = vmatpush.msra.mxu0 %v363
    %819 = vmatpush.msra.mxu0 %v359
    %820 = vmatpush.msra.mxu0 %v355
    %821 = vmatpush.msra.mxu0 %v351
    %822 = vmatmul.f32.gmra.mxu0 %v738
    %v823 = vpop.f32.mrf.mxu0
    %v824 = vadd.f32 0.0, %v823
    %825 = vdwg.mxu0
    %v826 = vadd.f32 %v742, %v764
    %v827 = vadd.f32 %v743, %v784
    %v828 = vadd.f32 %v744, %v804
    %v829 = vadd.f32 %v745, %v824
    %v830 = vmul.f32 %v826, 0.5
    %v831 = vtanh.pop %v830
    %v832 = vadd.f32 %v831, 1.0
    %v833 = vmul.f32 %v832, 0.5
    %v834 = vmul.f32 %v827, 0.5
    %v835 = vtanh.pop %v834
    %v836 = vadd.f32 %v835, 1.0
    %v837 = vmul.f32 %v836, 0.5
    %v838 = vtanh.pop %v828
    %v839 = vmul.f32 %v829, 0.5
    %v840 = vtanh.pop %v839
    %v841 = vadd.f32 %v840, 1.0
    %v842 = vmul.f32 %v841, 0.5
    %v843 = vmul.f32 %v837, %v736
    %v844 = vmul.f32 %v833, %v838
    %v845 = vadd.f32 %v843, %v844
    %v846 = vtanh.pop %v845
    %v847 = vmul.f32 %v842, %v846
    %s848 = smul.u32 4, 4
    %s849 = smul.addr %s848, 8
    %s850 = scalar_lea.vmem [#allocation2], %s849
    %v851 = vld [vmem:[%s850] sm:$0xff]
    %v852 = vld [vmem:[%s850 + $0x8] sm:$0xff]
    %v853 = vld [vmem:[%s850 + $0x10] sm:$0xff]
    %v854 = vld [vmem:[%s850 + $0x18] sm:$0xff]
    %855 = vmatpush.msra.mxu0 %v408
    %856 = vmatpush.msra.mxu0 %v404
    %857 = vmatpush.msra.mxu0 %v400
    %858 = vmatpush.msra.mxu0 %v396
    %859 = vmatpush.msra.mxu0 %v392
    %860 = vmatpush.msra.mxu0 %v388
    %861 = vmatpush.msra.mxu0 %v384
    %862 = vmatpush.msra.mxu0 %v380
    %863 = vmatpush.msra.mxu0 %v376
    %864 = vmatpush.msra.mxu0 %v372
    %865 = vmatpush.msra.mxu0 %v368
    %866 = vmatpush.msra.mxu0 %v364
    %867 = vmatpush.msra.mxu0 %v360
    %868 = vmatpush.msra.mxu0 %v356
    %869 = vmatpush.msra.mxu0 %v352
    %870 = vmatpush.msra.mxu0 %v348
    %871 = vmatmul.f32.gmra.mxu0 %v847
    %v872 = vpop.f32.mrf.mxu0
    %v873 = vadd.f32 0.0, %v872
    %874 = vdwg.mxu0
    %875 = vmatpush.msra.mxu0 %v409
    %876 = vmatpush.msra.mxu0 %v405
    %877 = vmatpush.msra.mxu0 %v401
    %878 = vmatpush.msra.mxu0 %v397
    %879 = vmatpush.msra.mxu0 %v393
    %880 = vmatpush.msra.mxu0 %v389
    %881 = vmatpush.msra.mxu0 %v385
    %882 = vmatpush.msra.mxu0 %v381
    %883 = vmatpush.msra.mxu0 %v377
    %884 = vmatpush.msra.mxu0 %v373
    %885 = vmatpush.msra.mxu0 %v369
    %886 = vmatpush.msra.mxu0 %v365
    %887 = vmatpush.msra.mxu0 %v361
    %888 = vmatpush.msra.mxu0 %v357
    %889 = vmatpush.msra.mxu0 %v353
    %890 = vmatpush.msra.mxu0 %v349
    %891 = vmatmul.f32.gmra.mxu0 %v847
    %v892 = vpop.f32.mrf.mxu0
    %v893 = vadd.f32 0.0, %v892
    %894 = vdwg.mxu0
    %895 = vmatpush.msra.mxu0 %v410
    %896 = vmatpush.msra.mxu0 %v406
    %897 = vmatpush.msra.mxu0 %v402
    %898 = vmatpush.msra.mxu0 %v398
    %899 = vmatpush.msra.mxu0 %v394
    %900 = vmatpush.msra.mxu0 %v390
    %901 = vmatpush.msra.mxu0 %v386
    %902 = vmatpush.msra.mxu0 %v382
    %903 = vmatpush.msra.mxu0 %v378
    %904 = vmatpush.msra.mxu0 %v374
    %905 = vmatpush.msra.mxu0 %v370
    %906 = vmatpush.msra.mxu0 %v366
    %907 = vmatpush.msra.mxu0 %v362
    %908 = vmatpush.msra.mxu0 %v358
    %909 = vmatpush.msra.mxu0 %v354
    %910 = vmatpush.msra.mxu0 %v350
    %911 = vmatmul.f32.gmra.mxu0 %v847
    %v912 = vpop.f32.mrf.mxu0
    %v913 = vadd.f32 0.0, %v912
    %914 = vdwg.mxu0
    %915 = vmatpush.msra.mxu0 %v411
    %916 = vmatpush.msra.mxu0 %v407
    %917 = vmatpush.msra.mxu0 %v403
    %918 = vmatpush.msra.mxu0 %v399
    %919 = vmatpush.msra.mxu0 %v395
    %920 = vmatpush.msra.mxu0 %v391
    %921 = vmatpush.msra.mxu0 %v387
    %922 = vmatpush.msra.mxu0 %v383
    %923 = vmatpush.msra.mxu0 %v379
    %924 = vmatpush.msra.mxu0 %v375
    %925 = vmatpush.msra.mxu0 %v371
    %926 = vmatpush.msra.mxu0 %v367
    %927 = vmatpush.msra.mxu0 %v363
    %928 = vmatpush.msra.mxu0 %v359
    %929 = vmatpush.msra.mxu0 %v355
    %930 = vmatpush.msra.mxu0 %v351
    %931 = vmatmul.f32.gmra.mxu0 %v847
    %v932 = vpop.f32.mrf.mxu0
    %v933 = vadd.f32 0.0, %v932
    %934 = vdwg.mxu0
    %v935 = vadd.f32 %v851, %v873
    %v936 = vadd.f32 %v852, %v893
    %v937 = vadd.f32 %v853, %v913
    %v938 = vadd.f32 %v854, %v933
    %v939 = vmul.f32 %v935, 0.5
    %v940 = vtanh.pop %v939
    %v941 = vadd.f32 %v940, 1.0
    %v942 = vmul.f32 %v941, 0.5
    %v943 = vmul.f32 %v936, 0.5
    %v944 = vtanh.pop %v943
    %v945 = vadd.f32 %v944, 1.0
    %v946 = vmul.f32 %v945, 0.5
    %v947 = vtanh.pop %v937
    %v948 = vmul.f32 %v938, 0.5
    %v949 = vtanh.pop %v948
    %v950 = vadd.f32 %v949, 1.0
    %v951 = vmul.f32 %v950, 0.5
    %v952 = vmul.f32 %v946, %v845
    %v953 = vmul.f32 %v942, %v947
    %v954 = vadd.f32 %v952, %v953
    %v955 = vtanh.pop %v954
    %v956 = vmul.f32 %v951, %v955
    %s957 = smul.u32 5, 4
    %s958 = smul.addr %s957, 8
    %s959 = scalar_lea.vmem [#allocation2], %s958
    %v960 = vld [vmem:[%s959] sm:$0xff]
    %v961 = vld [vmem:[%s959 + $0x8] sm:$0xff]
    %v962 = vld [vmem:[%s959 + $0x10] sm:$0xff]
    %v963 = vld [vmem:[%s959 + $0x18] sm:$0xff]
    %964 = vmatpush.msra.mxu0 %v408
    %965 = vmatpush.msra.mxu0 %v404
    %966 = vmatpush.msra.mxu0 %v400
    %967 = vmatpush.msra.mxu0 %v396
    %968 = vmatpush.msra.mxu0 %v392
    %969 = vmatpush.msra.mxu0 %v388
    %970 = vmatpush.msra.mxu0 %v384
    %971 = vmatpush.msra.mxu0 %v380
    %972 = vmatpush.msra.mxu0 %v376
    %973 = vmatpush.msra.mxu0 %v372
    %974 = vmatpush.msra.mxu0 %v368
    %975 = vmatpush.msra.mxu0 %v364
    %976 = vmatpush.msra.mxu0 %v360
    %977 = vmatpush.msra.mxu0 %v356
    %978 = vmatpush.msra.mxu0 %v352
    %979 = vmatpush.msra.mxu0 %v348
    %980 = vmatmul.f32.gmra.mxu0 %v956
    %v981 = vpop.f32.mrf.mxu0
    %v982 = vadd.f32 0.0, %v981
    %983 = vdwg.mxu0
    %984 = vmatpush.msra.mxu0 %v409
    %985 = vmatpush.msra.mxu0 %v405
    %986 = vmatpush.msra.mxu0 %v401
    %987 = vmatpush.msra.mxu0 %v397
    %988 = vmatpush.msra.mxu0 %v393
    %989 = vmatpush.msra.mxu0 %v389
    %990 = vmatpush.msra.mxu0 %v385
    %991 = vmatpush.msra.mxu0 %v381
    %992 = vmatpush.msra.mxu0 %v377
    %993 = vmatpush.msra.mxu0 %v373
    %994 = vmatpush.msra.mxu0 %v369
    %995 = vmatpush.msra.mxu0 %v365
    %996 = vmatpush.msra.mxu0 %v361
    %997 = vmatpush.msra.mxu0 %v357
    %998 = vmatpush.msra.mxu0 %v353
    %999 = vmatpush.msra.mxu0 %v349
    %1000 = vmatmul.f32.gmra.mxu0 %v956
    %v1001 = vpop.f32.mrf.mxu0
    %v1002 = vadd.f32 0.0, %v1001
    %1003 = vdwg.mxu0
    %1004 = vmatpush.msra.mxu0 %v410
    %1005 = vmatpush.msra.mxu0 %v406
    %1006 = vmatpush.msra.mxu0 %v402
    %1007 = vmatpush.msra.mxu0 %v398
    %1008 = vmatpush.msra.mxu0 %v394
    %1009 = vmatpush.msra.mxu0 %v390
    %1010 = vmatpush.msra.mxu0 %v386
    %1011 = vmatpush.msra.mxu0 %v382
    %1012 = vmatpush.msra.mxu0 %v378
    %1013 = vmatpush.msra.mxu0 %v374
    %1014 = vmatpush.msra.mxu0 %v370
    %1015 = vmatpush.msra.mxu0 %v366
    %1016 = vmatpush.msra.mxu0 %v362
    %1017 = vmatpush.msra.mxu0 %v358
    %1018 = vmatpush.msra.mxu0 %v354
    %1019 = vmatpush.msra.mxu0 %v350
    %1020 = vmatmul.f32.gmra.mxu0 %v956
    %v1021 = vpop.f32.mrf.mxu0
    %v1022 = vadd.f32 0.0, %v1021
    %1023 = vdwg.mxu0
    %1024 = vmatpush.msra.mxu0 %v411
    %1025 = vmatpush.msra.mxu0 %v407
    %1026 = vmatpush.msra.mxu0 %v403
    %1027 = vmatpush.msra.mxu0 %v399
    %1028 = vmatpush.msra.mxu0 %v395
    %1029 = vmatpush.msra.mxu0 %v391
    %1030 = vmatpush.msra.mxu0 %v387
    %1031 = vmatpush.msra.mxu0 %v383
    %1032 = vmatpush.msra.mxu0 %v379
    %1033 = vmatpush.msra.mxu0 %v375
    %1034 = vmatpush.msra.mxu0 %v371
    %1035 = vmatpush.msra.mxu0 %v367
    %1036 = vmatpush.msra.mxu0 %v363
    %1037 = vmatpush.msra.mxu0 %v359
    %1038 = vmatpush.msra.mxu0 %v355
    %1039 = vmatpush.msra.mxu0 %v351
    %1040 = vmatmul.f32.gmra.mxu0 %v956
    %v1041 = vpop.f32.mrf.mxu0
    %v1042 = vadd.f32 0.0, %v1041
    %1043 = vdwg.mxu0
    %v1044 = vadd.f32 %v960, %v982
    %v1045 = vadd.f32 %v961, %v1002
    %v1046 = vadd.f32 %v962, %v1022
    %v1047 = vadd.f32 %v963, %v1042
    %v1048 = vmul.f32 %v1044, 0.5
    %v1049 = vtanh.pop %v1048
    %v1050 = vadd.f32 %v1049, 1.0
    %v1051 = vmul.f32 %v1050, 0.5
    %v1052 = vmul.f32 %v1045, 0.5
    %v1053 = vtanh.pop %v1052
    %v1054 = vadd.f32 %v1053, 1.0
    %v1055 = vmul.f32 %v1054, 0.5
    %v1056 = vtanh.pop %v1046
    %v1057 = vmul.f32 %v1047, 0.5
    %v1058 = vtanh.pop %v1057
    %v1059 = vadd.f32 %v1058, 1.0
    %v1060 = vmul.f32 %v1059, 0.5
    %v1061 = vmul.f32 %v1055, %v954
    %v1062 = vmul.f32 %v1051, %v1056
    %v1063 = vadd.f32 %v1061, %v1062
    %v1064 = vtanh.pop %v1063
    %v1065 = vmul.f32 %v1060, %v1064
    %s1066 = smul.u32 6, 4
    %s1067 = smul.addr %s1066, 8
    %s1068 = scalar_lea.vmem [#allocation2], %s1067
    %v1069 = vld [vmem:[%s1068] sm:$0xff]
    %v1070 = vld [vmem:[%s1068 + $0x8] sm:$0xff]
    %v1071 = vld [vmem:[%s1068 + $0x10] sm:$0xff]
    %v1072 = vld [vmem:[%s1068 + $0x18] sm:$0xff]
    %1073 = vmatpush.msra.mxu0 %v408
    %1074 = vmatpush.msra.mxu0 %v404
    %1075 = vmatpush.msra.mxu0 %v400
    %1076 = vmatpush.msra.mxu0 %v396
    %1077 = vmatpush.msra.mxu0 %v392
    %1078 = vmatpush.msra.mxu0 %v388
    %1079 = vmatpush.msra.mxu0 %v384
    %1080 = vmatpush.msra.mxu0 %v380
    %1081 = vmatpush.msra.mxu0 %v376
    %1082 = vmatpush.msra.mxu0 %v372
    %1083 = vmatpush.msra.mxu0 %v368
    %1084 = vmatpush.msra.mxu0 %v364
    %1085 = vmatpush.msra.mxu0 %v360
    %1086 = vmatpush.msra.mxu0 %v356
    %1087 = vmatpush.msra.mxu0 %v352
    %1088 = vmatpush.msra.mxu0 %v348
    %1089 = vmatmul.f32.gmra.mxu0 %v1065
    %v1090 = vpop.f32.mrf.mxu0
    %v1091 = vadd.f32 0.0, %v1090
    %1092 = vdwg.mxu0
    %1093 = vmatpush.msra.mxu0 %v409
    %1094 = vmatpush.msra.mxu0 %v405
    %1095 = vmatpush.msra.mxu0 %v401
    %1096 = vmatpush.msra.mxu0 %v397
    %1097 = vmatpush.msra.mxu0 %v393
    %1098 = vmatpush.msra.mxu0 %v389
    %1099 = vmatpush.msra.mxu0 %v385
    %1100 = vmatpush.msra.mxu0 %v381
    %1101 = vmatpush.msra.mxu0 %v377
    %1102 = vmatpush.msra.mxu0 %v373
    %1103 = vmatpush.msra.mxu0 %v369
    %1104 = vmatpush.msra.mxu0 %v365
    %1105 = vmatpush.msra.mxu0 %v361
    %1106 = vmatpush.msra.mxu0 %v357
    %1107 = vmatpush.msra.mxu0 %v353
    %1108 = vmatpush.msra.mxu0 %v349
    %1109 = vmatmul.f32.gmra.mxu0 %v1065
    %v1110 = vpop.f32.mrf.mxu0
    %v1111 = vadd.f32 0.0, %v1110
    %1112 = vdwg.mxu0
    %1113 = vmatpush.msra.mxu0 %v410
    %1114 = vmatpush.msra.mxu0 %v406
    %1115 = vmatpush.msra.mxu0 %v402
    %1116 = vmatpush.msra.mxu0 %v398
    %1117 = vmatpush.msra.mxu0 %v394
    %1118 = vmatpush.msra.mxu0 %v390
    %1119 = vmatpush.msra.mxu0 %v386
    %1120 = vmatpush.msra.mxu0 %v382
    %1121 = vmatpush.msra.mxu0 %v378
    %1122 = vmatpush.msra.mxu0 %v374
    %1123 = vmatpush.msra.mxu0 %v370
    %1124 = vmatpush.msra.mxu0 %v366
    %1125 = vmatpush.msra.mxu0 %v362
    %1126 = vmatpush.msra.mxu0 %v358
    %1127 = vmatpush.msra.mxu0 %v354
    %1128 = vmatpush.msra.mxu0 %v350
    %1129 = vmatmul.f32.gmra.mxu0 %v1065
    %v1130 = vpop.f32.mrf.mxu0
    %v1131 = vadd.f32 0.0, %v1130
    %1132 = vdwg.mxu0
    %1133 = vmatpush.msra.mxu0 %v411
    %1134 = vmatpush.msra.mxu0 %v407
    %1135 = vmatpush.msra.mxu0 %v403
    %1136 = vmatpush.msra.mxu0 %v399
    %1137 = vmatpush.msra.mxu0 %v395
    %1138 = vmatpush.msra.mxu0 %v391
    %1139 = vmatpush.msra.mxu0 %v387
    %1140 = vmatpush.msra.mxu0 %v383
    %1141 = vmatpush.msra.mxu0 %v379
    %1142 = vmatpush.msra.mxu0 %v375
    %1143 = vmatpush.msra.mxu0 %v371
    %1144 = vmatpush.msra.mxu0 %v367
    %1145 = vmatpush.msra.mxu0 %v363
    %1146 = vmatpush.msra.mxu0 %v359
    %1147 = vmatpush.msra.mxu0 %v355
    %1148 = vmatpush.msra.mxu0 %v351
    %1149 = vmatmul.f32.gmra.mxu0 %v1065
    %v1150 = vpop.f32.mrf.mxu0
    %v1151 = vadd.f32 0.0, %v1150
    %1152 = vdwg.mxu0
    %v1153 = vadd.f32 %v1069, %v1091
    %v1154 = vadd.f32 %v1070, %v1111
    %v1155 = vadd.f32 %v1071, %v1131
    %v1156 = vadd.f32 %v1072, %v1151
    %v1157 = vmul.f32 %v1153, 0.5
    %v1158 = vtanh.pop %v1157
    %v1159 = vadd.f32 %v1158, 1.0
    %v1160 = vmul.f32 %v1159, 0.5
    %v1161 = vmul.f32 %v1154, 0.5
    %v1162 = vtanh.pop %v1161
    %v1163 = vadd.f32 %v1162, 1.0
    %v1164 = vmul.f32 %v1163, 0.5
    %v1165 = vtanh.pop %v1155
    %v1166 = vmul.f32 %v1156, 0.5
    %v1167 = vtanh.pop %v1166
    %v1168 = vadd.f32 %v1167, 1.0
    %v1169 = vmul.f32 %v1168, 0.5
    %v1170 = vmul.f32 %v1164, %v1063
    %v1171 = vmul.f32 %v1160, %v1165
    %v1172 = vadd.f32 %v1170, %v1171
    %v1173 = vtanh.pop %v1172
    %v1174 = vmul.f32 %v1169, %v1173
    %s1175 = smul.u32 7, 4
    %s1176 = smul.addr %s1175, 8
    %s1177 = scalar_lea.vmem [#allocation2], %s1176
    %v1178 = vld [vmem:[%s1177] sm:$0xff]
    %v1179 = vld [vmem:[%s1177 + $0x8] sm:$0xff]
    %v1180 = vld [vmem:[%s1177 + $0x10] sm:$0xff]
    %v1181 = vld [vmem:[%s1177 + $0x18] sm:$0xff]
    %1182 = vmatpush.msra.mxu0 %v408
    %1183 = vmatpush.msra.mxu0 %v404
    %1184 = vmatpush.msra.mxu0 %v400
    %1185 = vmatpush.msra.mxu0 %v396
    %1186 = vmatpush.msra.mxu0 %v392
    %1187 = vmatpush.msra.mxu0 %v388
    %1188 = vmatpush.msra.mxu0 %v384
    %1189 = vmatpush.msra.mxu0 %v380
    %1190 = vmatpush.msra.mxu0 %v376
    %1191 = vmatpush.msra.mxu0 %v372
    %1192 = vmatpush.msra.mxu0 %v368
    %1193 = vmatpush.msra.mxu0 %v364
    %1194 = vmatpush.msra.mxu0 %v360
    %1195 = vmatpush.msra.mxu0 %v356
    %1196 = vmatpush.msra.mxu0 %v352
    %1197 = vmatpush.msra.mxu0 %v348
    %1198 = vmatmul.f32.gmra.mxu0 %v1174
    %v1199 = vpop.f32.mrf.mxu0
    %v1200 = vadd.f32 0.0, %v1199
    %1201 = vdwg.mxu0
    %1202 = vmatpush.msra.mxu0 %v409
    %1203 = vmatpush.msra.mxu0 %v405
    %1204 = vmatpush.msra.mxu0 %v401
    %1205 = vmatpush.msra.mxu0 %v397
    %1206 = vmatpush.msra.mxu0 %v393
    %1207 = vmatpush.msra.mxu0 %v389
    %1208 = vmatpush.msra.mxu0 %v385
    %1209 = vmatpush.msra.mxu0 %v381
    %1210 = vmatpush.msra.mxu0 %v377
    %1211 = vmatpush.msra.mxu0 %v373
    %1212 = vmatpush.msra.mxu0 %v369
    %1213 = vmatpush.msra.mxu0 %v365
    %1214 = vmatpush.msra.mxu0 %v361
    %1215 = vmatpush.msra.mxu0 %v357
    %1216 = vmatpush.msra.mxu0 %v353
    %1217 = vmatpush.msra.mxu0 %v349
    %1218 = vmatmul.f32.gmra.mxu0 %v1174
    %v1219 = vpop.f32.mrf.mxu0
    %v1220 = vadd.f32 0.0, %v1219
    %1221 = vdwg.mxu0
    %1222 = vmatpush.msra.mxu0 %v410
    %1223 = vmatpush.msra.mxu0 %v406
    %1224 = vmatpush.msra.mxu0 %v402
    %1225 = vmatpush.msra.mxu0 %v398
    %1226 = vmatpush.msra.mxu0 %v394
    %1227 = vmatpush.msra.mxu0 %v390
    %1228 = vmatpush.msra.mxu0 %v386
    %1229 = vmatpush.msra.mxu0 %v382
    %1230 = vmatpush.msra.mxu0 %v378
    %1231 = vmatpush.msra.mxu0 %v374
    %1232 = vmatpush.msra.mxu0 %v370
    %1233 = vmatpush.msra.mxu0 %v366
    %1234 = vmatpush.msra.mxu0 %v362
    %1235 = vmatpush.msra.mxu0 %v358
    %1236 = vmatpush.msra.mxu0 %v354
    %1237 = vmatpush.msra.mxu0 %v350
    %1238 = vmatmul.f32.gmra.mxu0 %v1174
    %v1239 = vpop.f32.mrf.mxu0
    %v1240 = vadd.f32 0.0, %v1239
    %1241 = vdwg.mxu0
    %1242 = vmatpush.msra.mxu0 %v411
    %1243 = vmatpush.msra.mxu0 %v407
    %1244 = vmatpush.msra.mxu0 %v403
    %1245 = vmatpush.msra.mxu0 %v399
    %1246 = vmatpush.msra.mxu0 %v395
    %1247 = vmatpush.msra.mxu0 %v391
    %1248 = vmatpush.msra.mxu0 %v387
    %1249 = vmatpush.msra.mxu0 %v383
    %1250 = vmatpush.msra.mxu0 %v379
    %1251 = vmatpush.msra.mxu0 %v375
    %1252 = vmatpush.msra.mxu0 %v371
    %1253 = vmatpush.msra.mxu0 %v367
    %1254 = vmatpush.msra.mxu0 %v363
    %1255 = vmatpush.msra.mxu0 %v359
    %1256 = vmatpush.msra.mxu0 %v355
    %1257 = vmatpush.msra.mxu0 %v351
    %1258 = vmatmul.f32.gmra.mxu0 %v1174
    %v1259 = vpop.f32.mrf.mxu0
    %v1260 = vadd.f32 0.0, %v1259
    %1261 = vdwg.mxu0
    %v1262 = vadd.f32 %v1178, %v1200
    %v1263 = vadd.f32 %v1179, %v1220
    %v1264 = vadd.f32 %v1180, %v1240
    %v1265 = vadd.f32 %v1181, %v1260
    %v1266 = vmul.f32 %v1262, 0.5
    %v1267 = vtanh.pop %v1266
    %v1268 = vadd.f32 %v1267, 1.0
    %v1269 = vmul.f32 %v1268, 0.5
    %v1270 = vmul.f32 %v1263, 0.5
    %v1271 = vtanh.pop %v1270
    %v1272 = vadd.f32 %v1271, 1.0
    %v1273 = vmul.f32 %v1272, 0.5
    %v1274 = vtanh.pop %v1264
    %v1275 = vmul.f32 %v1265, 0.5
    %v1276 = vtanh.pop %v1275
    %v1277 = vadd.f32 %v1276, 1.0
    %v1278 = vmul.f32 %v1277, 0.5
    %v1279 = vmul.f32 %v1273, %v1172
    %v1280 = vmul.f32 %v1269, %v1274
    %v1281 = vadd.f32 %v1279, %v1280
    %v1282 = vtanh.pop %v1281
    %v1283 = vmul.f32 %v1278, %v1282
    %v1284 = vld [vmem:[#allocation11] sm:$0xff]
    %v1285 = vld [vmem:[#allocation11 + $0x8] sm:$0xff]
    %v1286 = vld [vmem:[#allocation11 + $0x10] sm:$0xff]
    %v1287 = vld [vmem:[#allocation11 + $0x18] sm:$0xff]
    %v1288 = vld [vmem:[#allocation11 + $0x20] sm:$0xff]
    %v1289 = vld [vmem:[#allocation11 + $0x28] sm:$0xff]
    %v1290 = vld [vmem:[#allocation11 + $0x30] sm:$0xff]
    %v1291 = vld [vmem:[#allocation11 + $0x38] sm:$0xff]
    %v1292 = vld [vmem:[#allocation11 + $0x40] sm:$0xff]
    %v1293 = vld [vmem:[#allocation11 + $0x48] sm:$0xff]
    %v1294 = vld [vmem:[#allocation11 + $0x50] sm:$0xff]
    %v1295 = vld [vmem:[#allocation11 + $0x58] sm:$0xff]
    %v1296 = vld [vmem:[#allocation11 + $0x60] sm:$0xff]
    %v1297 = vld [vmem:[#allocation11 + $0x68] sm:$0xff]
    %v1298 = vld [vmem:[#allocation11 + $0x70] sm:$0xff]
    %v1299 = vld [vmem:[#allocation11 + $0x78] sm:$0xff]
    %v1300 = vld [vmem:[%s5] sm:$0x1]
    %v1302 = vperm.slane %v1300, 0
    %1304 = vmatpush.msra.mxu0 %v1299
    %1305 = vmatpush.msra.mxu0 %v1298
    %1306 = vmatpush.msra.mxu0 %v1297
    %1307 = vmatpush.msra.mxu0 %v1296
    %1308 = vmatpush.msra.mxu0 %v1295
    %1309 = vmatpush.msra.mxu0 %v1294
    %1310 = vmatpush.msra.mxu0 %v1293
    %1311 = vmatpush.msra.mxu0 %v1292
    %1312 = vmatpush.msra.mxu0 %v1291
    %1313 = vmatpush.msra.mxu0 %v1290
    %1314 = vmatpush.msra.mxu0 %v1289
    %1315 = vmatpush.msra.mxu0 %v1288
    %1316 = vmatpush.msra.mxu0 %v1287
    %1317 = vmatpush.msra.mxu0 %v1286
    %1318 = vmatpush.msra.mxu0 %v1285
    %1319 = vmatpush.msra.mxu0 %v1284
    %1320 = vmatmul.f32.gmra.mxu0 %v1283
    %v1321 = vpop.f32.mrf.mxu0
    %v1322 = vadd.f32 %v1302, %v1321
    %1323 = vdwg.mxu0
    %1324 = vst [vmem:[#allocation12] sm:$0xff] %v1322
    // Predicated region
    $region46: #{tpu_custom_call.1} parent=1 // pred_check
      _
    $region47: #{tpu_custom_call.1} parent=1 // pred_check_branch
      %1326 = sbr.rel (0) target = $region49
    $region48: #{tpu_custom_call.1} parent=1 // pred_region
      %1328 = vsyncadd [#allocation5], 0
      %s1330 = sshll.u32 [#allocation12], 4
      %s1331 = int_to_ptr.vmem [resolvable:$true] %s1330
      %s1332 = sshll.u32 %s6, 4
      %s1333 = int_to_ptr.hbm [resolvable:$true] %s1332
      %1335 = dma.vmem_to_hbm [thread:$0]  %s1331, 128, %s1333, [#allocation5]
    $region49: #{tpu_custom_call.1} parent=1 // pred_fallthru
      _
    // Predicated region
    $region50: #{tpu_custom_call.1} parent=1 // pred_check
      _
    $region51: #{tpu_custom_call.1} parent=1 // pred_check_branch
      %1337 = sbr.rel (0) target = $region53
    $region52: #{tpu_custom_call.1} parent=1 // pred_region
      %1339 = dma.done [#allocation5], 128
    $region53: #{tpu_custom_call.1} parent=1 // pred_fallthru
      _
    %1340 = vsyncpa [#allocation4], 1
    %1341 = vsyncpa [#allocation7], 1
    %1342 = vsyncpa [#allocation10], 1
    %1343 = vsyncpa [#allocation5], 1

</llo_original>
